<compile_context>
chip_gen: v7x
topology: tpu7x:2x2x1
jax: 0.10.0
libtpu: 0.0.40
codegen_flags: <defaults>
</compile_context>

<pallas_src>
import functools

import jax
import jax.numpy as jnp
from jax.experimental import pallas as pl
from jax.experimental.pallas import tpu as pltpu


def _cln_kernel(eps, n_chan, tile_t, x_ref, gain_ref, bias_ref, o_ref, carry_ref):
    """One (batch, time-tile) step of cumulative layer norm.

    x_ref:     (1, C, tile_t)  VMEM input block (native dtype)
    gain_ref:  (C, 1)          VMEM per-channel gain (f32)
    bias_ref:  (C, 1)          VMEM per-channel bias (f32)
    o_ref:     (1, C, tile_t)  VMEM output block (native dtype)
    carry_ref: (2, 1)          VMEM scratch: running [cum_sum, cum_pow_sum] (f32)
    """
    t_idx = pl.program_id(1)

    # New batch sequence starts -> reset the running cumulative statistics.
    @pl.when(t_idx == 0)
    def _():
        carry_ref[...] = jnp.zeros_like(carry_ref)

    x = x_ref[0].astype(jnp.float32)                       # (C, tile_t) f32

    # Per-timestep channel statistics (sublane reduction).
    step_sum = jnp.sum(x, axis=0, keepdims=True)           # (1, tile_t)
    step_pow = jnp.sum(x * x, axis=0, keepdims=True)       # (1, tile_t)
    cum = jnp.concatenate([step_sum, step_pow], axis=0)    # (2, tile_t)

    # Inclusive cumulative sum along the lane (time) axis:
    # Hillis-Steele scan, log2(tile_t) steps of XLU roll + masked VPU add.
    # Wrapped-around lanes are masked out, so garbage/padding in later lanes can
    # never contaminate earlier (valid) lanes.
    lane = jax.lax.broadcasted_iota(jnp.int32, (2, tile_t), 1)
    k = 1
    while k < tile_t:
        shifted = pltpu.roll(cum, shift=k, axis=1)         # shifted[:, t] = cum[:, t-k]
        cum = cum + jnp.where(lane >= k, shifted, 0.0)
        k *= 2

    # Add running totals from previous time tiles; update the carry with this
    # tile's final column.  (The carry written by the last tile of a batch is
    # never consumed: it is reset at t == 0 of the next batch.)
    cum = cum + carry_ref[...]                             # (2,1) bcast over lanes
    carry_ref[...] = cum[:, tile_t - 1:tile_t]

    # entry_cnt[t] = C * (global_t + 1), computed in f32 (no int32 overflow).
    local = jax.lax.broadcasted_iota(jnp.int32, (1, tile_t), 1).astype(jnp.float32)
    base = (t_idx * tile_t + 1).astype(jnp.float32)
    entry = (local + base) * float(n_chan)                 # (1, tile_t)
    # Exact divide on the tiny (1, tile_t) vector (kept exact for accuracy; the
    # expensive full-tile divide below is replaced by rsqrt + multiply).
    inv_cnt = 1.0 / entry

    cum_sum = cum[0:1, :]
    cum_pow = cum[1:2, :]
    cum_mean = cum_sum * inv_cnt
    cum_var = (cum_pow - 2.0 * cum_mean * cum_sum) * inv_cnt + cum_mean * cum_mean
    inv_std = jax.lax.rsqrt(cum_var + eps)                 # (1, tile_t), EUP slot

    y = (x - cum_mean) * inv_std                           # bcast over C sublanes
    o_ref[0] = (y * gain_ref[...] + bias_ref[...]).astype(o_ref.dtype)


def _pick_tile_t(t_padded, n_chan):
    """Largest lane-dense tile that divides the (128-padded) time extent and keeps
    the per-block f32 working set small enough for comfortable double-buffering."""
    budget_bytes = 2 * 1024 * 1024
    for cand in (2048, 1024, 512, 384, 256, 128):
        if t_padded % cand == 0 and n_chan * cand * 4 <= budget_bytes:
            return cand
    return 128


def cln_forward(x, gain, bias, *, eps=1e-8, tile_t=None):
    """x: (B, C, T); gain/bias: (1, C, 1).  Returns (B, C, T) in x.dtype."""
    B, C, T = x.shape
    out_dtype = x.dtype

    # Keep every kernel block lane-dense (multiple of 128): pad time with zeros
    # only in the rare case T % 128 != 0.  Trailing zero columns cannot affect
    # earlier cumulative statistics; they are sliced off afterwards.
    T_pad = ((T + 127) // 128) * 128
    x_in = x if T_pad == T else jnp.pad(x, ((0, 0), (0, 0), (0, T_pad - T)))

    if tile_t is None:
        tile_t = _pick_tile_t(T_pad, C)
    assert T_pad % tile_t == 0, "tile_t must divide the (128-padded) time extent"
    n_t = T_pad // tile_t

    gain2 = jnp.asarray(gain, jnp.float32).reshape(C, 1)
    bias2 = jnp.asarray(bias, jnp.float32).reshape(C, 1)

    out = pl.pallas_call(
        functools.partial(_cln_kernel, float(eps), C, tile_t),
        out_shape=jax.ShapeDtypeStruct((B, C, T_pad), out_dtype),
        grid_spec=pltpu.PrefetchScalarGridSpec(
            num_scalar_prefetch=0,
            grid=(B, n_t),
            in_specs=[
                pl.BlockSpec((1, C, tile_t), lambda b, t: (b, 0, t)),  # x
                pl.BlockSpec((C, 1), lambda b, t: (0, 0)),             # gain
                pl.BlockSpec((C, 1), lambda b, t: (0, 0)),             # bias
            ],
            out_specs=pl.BlockSpec((1, C, tile_t), lambda b, t: (b, 0, t)),
            scratch_shapes=[pltpu.VMEM((2, 1), jnp.float32)],          # running sums
        ),
        compiler_params=pltpu.CompilerParams(
            dimension_semantics=("parallel", "arbitrary")),
    )(x_in, gain2, bias2)

    if T_pad != T:
        out = out[:, :, :T]
    return out


def cln_reference(x, gain, bias, *, eps=1e-8):
    """Pure-JAX reference mirroring the PyTorch forward exactly."""
    B, C, T = x.shape
    x = x.astype(jnp.float32)
    step_sum = x.sum(axis=1)                                  # (B, T)
    step_pow = (x * x).sum(axis=1)                            # (B, T)
    cum_sum = jnp.cumsum(step_sum, axis=1)
    cum_pow = jnp.cumsum(step_pow, axis=1)
    entry_cnt = (C * jnp.arange(1, T + 1)).astype(jnp.float32)[None, :]
    cum_mean = cum_sum / entry_cnt
    cum_var = (cum_pow - 2.0 * cum_mean * cum_sum) / entry_cnt + cum_mean ** 2
    cum_std = jnp.sqrt(cum_var + eps)
    xn = (x - cum_mean[:, None, :]) / cum_std[:, None, :]
    return xn * gain + bias


if __name__ == "__main__":
    key = jax.random.PRNGKey(0)
    kx, kg, kb, kx2 = jax.random.split(key, 4)

    # Config 1: B=2, dimension=32, T=1024, default (single 1024-wide time tile).
    B, C, T = 2, 32, 1024
    x = jax.random.normal(kx, (B, C, T), jnp.float32)
    gain = 1.0 + 0.1 * jax.random.normal(kg, (1, C, 1), jnp.float32)
    bias = 0.1 * jax.random.normal(kb, (1, C, 1), jnp.float32)

    out = jax.block_until_ready(cln_forward(x, gain, bias))
    ref = jax.block_until_ready(cln_reference(x, gain, bias))
    assert out.shape == (B, C, T), out.shape
    assert out.dtype == jnp.float32
    assert jnp.allclose(out, ref, rtol=1e-3, atol=1e-3), float(jnp.abs(out - ref).max())

    # Config 2: same data, forced tile_t=256 -> 4 time tiles per batch
    # (exercises the cross-tile cumulative carry + reset at t == 0).
    out_t = jax.block_until_ready(cln_forward(x, gain, bias, tile_t=256))
    assert jnp.allclose(out_t, ref, rtol=1e-3, atol=1e-3), float(jnp.abs(out_t - ref).max())

    # Config 3: odd time length (not a multiple of 128) -> wrapper pads / slices.
    B2, C2, T2 = 1, 16, 100
    x2 = jax.random.normal(kx2, (B2, C2, T2), jnp.float32)
    g2 = jnp.ones((1, C2, 1), jnp.float32)
    b2 = jnp.zeros((1, C2, 1), jnp.float32)
    out2 = jax.block_until_ready(cln_forward(x2, g2, b2))
    ref2 = jax.block_until_ready(cln_reference(x2, g2, b2))
    assert out2.shape == (B2, C2, T2)
    assert jnp.allclose(out2, ref2, rtol=1e-3, atol=1e-3), float(jnp.abs(out2 - ref2).max())

    # Config 4: bf16 I/O (native-dtype in/out, f32 stats inside the kernel).
    xb = x.astype(jnp.bfloat16)
    outb = jax.block_until_ready(cln_forward(xb, gain, bias))
    refb = cln_reference(xb.astype(jnp.float32), gain, bias)
    assert outb.dtype == jnp.bfloat16
    assert jnp.allclose(outb.astype(jnp.float32), refb, rtol=5e-2, atol=5e-2), \
        float(jnp.abs(outb.astype(jnp.float32) - refb).max())

    print("KERNEL_OK")
</pallas_src>

<mosaic_0001>
module attributes {stable_mosaic.version = 11 : i64} {
  func.func @_cln_kernel(%arg0: i32, %arg1: i32, %arg2: memref<1x32x1024xf32, #tpu.memory_space<vmem>>, %arg3: memref<32x1xf32, #tpu.memory_space<vmem>>, %arg4: memref<32x1xf32, #tpu.memory_space<vmem>>, %arg5: memref<1x32x1024xf32, #tpu.memory_space<vmem>>, %arg6: memref<2x1xf32, #tpu.memory_space<vmem>>) attributes {dimension_semantics = [#tpu.dimension_semantics<parallel>, #tpu.dimension_semantics<arbitrary>], iteration_bounds = array<i64: 2, 1>, scalar_prefetch = 0 : i64, scratch_operands = 1 : i64, tpu.core_type = #tpu.core_type<tc>, window_params = [{transform_indices = @transform_0, window_bounds = array<i64: 1, 32, 1024>}, {pipeline_mode = #tpu.pipeline_mode<synchronous>, transform_indices = @transform_1, window_bounds = array<i64: 32, 1>}, {pipeline_mode = #tpu.pipeline_mode<synchronous>, transform_indices = @transform_2, window_bounds = array<i64: 32, 1>}, {transform_indices = @transform_3, window_bounds = array<i64: 1, 32, 1024>}]} {
    %c0_i32 = arith.constant 0 : i32
    %0 = arith.cmpi eq, %arg1, %c0_i32 : i32
    %1 = arith.extui %0 : i1 to i32
    %c0_i32_0 = arith.constant 0 : i32
    %2 = arith.cmpi ne, %1, %c0_i32_0 : i32
    scf.if %2 {
      %cst_40 = arith.constant 0.000000e+00 : f32
      %114 = vector.broadcast %cst_40 : f32 to vector<2x1xf32>
      %c0_41 = arith.constant 0 : index
      %c0_42 = arith.constant 0 : index
      %115 = vector.load %arg6[%c0_41, %c0_42] : memref<2x1xf32, #tpu.memory_space<vmem>>, vector<2x1xf32>
      tpu.vector_store %arg6[%c0_41, %c0_42], %114 {strides = array<i32>} : memref<2x1xf32, #tpu.memory_space<vmem>>, vector<2x1xf32>,
    } else {
    }
    %c0 = arith.constant 0 : index
    %c0_1 = arith.constant 0 : index
    %c0_2 = arith.constant 0 : index
    %3 = vector.load %arg2[%c0, %c0_1, %c0_2] : memref<1x32x1024xf32, #tpu.memory_space<vmem>>, vector<1x32x1024xf32>
    %4 = vector.shape_cast %3 : vector<1x32x1024xf32> to vector<32x1024xf32>
    %cst = arith.constant dense<0.000000e+00> : vector<1024xf32>
    %5 = vector.multi_reduction <add>, %4, %cst [0] : vector<32x1024xf32> to vector<1024xf32>
    %6 = vector.shape_cast %5 : vector<1024xf32> to vector<1x1024xf32>
    %7 = arith.mulf %4, %4 : vector<32x1024xf32>
    %cst_3 = arith.constant dense<0.000000e+00> : vector<1024xf32>
    %8 = vector.multi_reduction <add>, %7, %cst_3 [0] : vector<32x1024xf32> to vector<1024xf32>
    %9 = vector.shape_cast %8 : vector<1024xf32> to vector<1x1024xf32>
    %10 = tpu.concatenate %6, %9 in 0 : vector<1x1024xf32>, vector<1x1024xf32> -> vector<2x1024xf32>
    %11 = tpu.iota {dimensions = array<i32: 1>} : vector<2x1024xi32>
    %c1_i32 = arith.constant 1 : i32
    %12 = tpu.dynamic_rotate %10 by %c1_i32 dim 1 : vector<2x1024xf32>, i32 -> vector<2x1024xf32>
    %c1_i32_4 = arith.constant 1 : i32
    %13 = vector.broadcast %c1_i32_4 : i32 to vector<2x1024xi32>
    %14 = arith.cmpi sge, %11, %13 : vector<2x1024xi32>
    %cst_5 = arith.constant 0.000000e+00 : f32
    %15 = vector.broadcast %cst_5 : f32 to vector<2x1024xf32>
    %16 = arith.select %14, %12, %15 : vector<2x1024xi1>, vector<2x1024xf32>
    %17 = arith.addf %10, %16 : vector<2x1024xf32>
    %c2_i32 = arith.constant 2 : i32
    %18 = tpu.dynamic_rotate %17 by %c2_i32 dim 1 : vector<2x1024xf32>, i32 -> vector<2x1024xf32>
    %c2_i32_6 = arith.constant 2 : i32
    %19 = vector.broadcast %c2_i32_6 : i32 to vector<2x1024xi32>
    %20 = arith.cmpi sge, %11, %19 : vector<2x1024xi32>
    %cst_7 = arith.constant 0.000000e+00 : f32
    %21 = vector.broadcast %cst_7 : f32 to vector<2x1024xf32>
    %22 = arith.select %20, %18, %21 : vector<2x1024xi1>, vector<2x1024xf32>
    %23 = arith.addf %17, %22 : vector<2x1024xf32>
    %c4_i32 = arith.constant 4 : i32
    %24 = tpu.dynamic_rotate %23 by %c4_i32 dim 1 : vector<2x1024xf32>, i32 -> vector<2x1024xf32>
    %c4_i32_8 = arith.constant 4 : i32
    %25 = vector.broadcast %c4_i32_8 : i32 to vector<2x1024xi32>
    %26 = arith.cmpi sge, %11, %25 : vector<2x1024xi32>
    %cst_9 = arith.constant 0.000000e+00 : f32
    %27 = vector.broadcast %cst_9 : f32 to vector<2x1024xf32>
    %28 = arith.select %26, %24, %27 : vector<2x1024xi1>, vector<2x1024xf32>
    %29 = arith.addf %23, %28 : vector<2x1024xf32>
    %c8_i32 = arith.constant 8 : i32
    %30 = tpu.dynamic_rotate %29 by %c8_i32 dim 1 : vector<2x1024xf32>, i32 -> vector<2x1024xf32>
    %c8_i32_10 = arith.constant 8 : i32
    %31 = vector.broadcast %c8_i32_10 : i32 to vector<2x1024xi32>
    %32 = arith.cmpi sge, %11, %31 : vector<2x1024xi32>
    %cst_11 = arith.constant 0.000000e+00 : f32
    %33 = vector.broadcast %cst_11 : f32 to vector<2x1024xf32>
    %34 = arith.select %32, %30, %33 : vector<2x1024xi1>, vector<2x1024xf32>
    %35 = arith.addf %29, %34 : vector<2x1024xf32>
    %c16_i32 = arith.constant 16 : i32
    %36 = tpu.dynamic_rotate %35 by %c16_i32 dim 1 : vector<2x1024xf32>, i32 -> vector<2x1024xf32>
    %c16_i32_12 = arith.constant 16 : i32
    %37 = vector.broadcast %c16_i32_12 : i32 to vector<2x1024xi32>
    %38 = arith.cmpi sge, %11, %37 : vector<2x1024xi32>
    %cst_13 = arith.constant 0.000000e+00 : f32
    %39 = vector.broadcast %cst_13 : f32 to vector<2x1024xf32>
    %40 = arith.select %38, %36, %39 : vector<2x1024xi1>, vector<2x1024xf32>
    %41 = arith.addf %35, %40 : vector<2x1024xf32>
    %c32_i32 = arith.constant 32 : i32
    %42 = tpu.dynamic_rotate %41 by %c32_i32 dim 1 : vector<2x1024xf32>, i32 -> vector<2x1024xf32>
    %c32_i32_14 = arith.constant 32 : i32
    %43 = vector.broadcast %c32_i32_14 : i32 to vector<2x1024xi32>
    %44 = arith.cmpi sge, %11, %43 : vector<2x1024xi32>
    %cst_15 = arith.constant 0.000000e+00 : f32
    %45 = vector.broadcast %cst_15 : f32 to vector<2x1024xf32>
    %46 = arith.select %44, %42, %45 : vector<2x1024xi1>, vector<2x1024xf32>
    %47 = arith.addf %41, %46 : vector<2x1024xf32>
    %c64_i32 = arith.constant 64 : i32
    %48 = tpu.dynamic_rotate %47 by %c64_i32 dim 1 : vector<2x1024xf32>, i32 -> vector<2x1024xf32>
    %c64_i32_16 = arith.constant 64 : i32
    %49 = vector.broadcast %c64_i32_16 : i32 to vector<2x1024xi32>
    %50 = arith.cmpi sge, %11, %49 : vector<2x1024xi32>
    %cst_17 = arith.constant 0.000000e+00 : f32
    %51 = vector.broadcast %cst_17 : f32 to vector<2x1024xf32>
    %52 = arith.select %50, %48, %51 : vector<2x1024xi1>, vector<2x1024xf32>
    %53 = arith.addf %47, %52 : vector<2x1024xf32>
    %c128_i32 = arith.constant 128 : i32
    %54 = tpu.dynamic_rotate %53 by %c128_i32 dim 1 : vector<2x1024xf32>, i32 -> vector<2x1024xf32>
    %c128_i32_18 = arith.constant 128 : i32
    %55 = vector.broadcast %c128_i32_18 : i32 to vector<2x1024xi32>
    %56 = arith.cmpi sge, %11, %55 : vector<2x1024xi32>
    %cst_19 = arith.constant 0.000000e+00 : f32
    %57 = vector.broadcast %cst_19 : f32 to vector<2x1024xf32>
    %58 = arith.select %56, %54, %57 : vector<2x1024xi1>, vector<2x1024xf32>
    %59 = arith.addf %53, %58 : vector<2x1024xf32>
    %c256_i32 = arith.constant 256 : i32
    %60 = tpu.dynamic_rotate %59 by %c256_i32 dim 1 : vector<2x1024xf32>, i32 -> vector<2x1024xf32>
    %c256_i32_20 = arith.constant 256 : i32
    %61 = vector.broadcast %c256_i32_20 : i32 to vector<2x1024xi32>
    %62 = arith.cmpi sge, %11, %61 : vector<2x1024xi32>
    %cst_21 = arith.constant 0.000000e+00 : f32
    %63 = vector.broadcast %cst_21 : f32 to vector<2x1024xf32>
    %64 = arith.select %62, %60, %63 : vector<2x1024xi1>, vector<2x1024xf32>
    %65 = arith.addf %59, %64 : vector<2x1024xf32>
    %c512_i32 = arith.constant 512 : i32
    %66 = tpu.dynamic_rotate %65 by %c512_i32 dim 1 : vector<2x1024xf32>, i32 -> vector<2x1024xf32>
    %c512_i32_22 = arith.constant 512 : i32
    %67 = vector.broadcast %c512_i32_22 : i32 to vector<2x1024xi32>
    %68 = arith.cmpi sge, %11, %67 : vector<2x1024xi32>
    %cst_23 = arith.constant 0.000000e+00 : f32
    %69 = vector.broadcast %cst_23 : f32 to vector<2x1024xf32>
    %70 = arith.select %68, %66, %69 : vector<2x1024xi1>, vector<2x1024xf32>
    %71 = arith.addf %65, %70 : vector<2x1024xf32>
    %c0_24 = arith.constant 0 : index
    %c0_25 = arith.constant 0 : index
    %72 = vector.load %arg6[%c0_24, %c0_25] : memref<2x1xf32, #tpu.memory_space<vmem>>, vector<2x1xf32>
    %73 = vector.broadcast %72 : vector<2x1xf32> to vector<2x1024xf32>
    %74 = arith.addf %71, %73 : vector<2x1024xf32>
    %75 = vector.extract_strided_slice %74 {offsets = [0, 1023], sizes = [2, 1], strides = [1, 1]} : vector<2x1024xf32> to vector<2x1xf32>
    %c0_26 = arith.constant 0 : index
    %c0_27 = arith.constant 0 : index
    %76 = vector.load %arg6[%c0_26, %c0_27] : memref<2x1xf32, #tpu.memory_space<vmem>>, vector<2x1xf32>
    tpu.vector_store %arg6[%c0_26, %c0_27], %75 {strides = array<i32>} : memref<2x1xf32, #tpu.memory_space<vmem>>, vector<2x1xf32>,
    %77 = tpu.iota {dimensions = array<i32: 1>} : vector<1x1024xi32>
    %78 = arith.sitofp %77 : vector<1x1024xi32> to vector<1x1024xf32>
    %c1024_i32 = arith.constant 1024 : i32
    %79 = arith.muli %arg1, %c1024_i32 : i32
    %c1_i32_28 = arith.constant 1 : i32
    %80 = arith.addi %79, %c1_i32_28 : i32
    %81 = arith.sitofp %80 : i32 to f32
    %82 = vector.broadcast %81 : f32 to vector<1x1024xf32>
    %83 = arith.addf %78, %82 : vector<1x1024xf32>
    %cst_29 = arith.constant 3.200000e+01 : f32
    %84 = vector.broadcast %cst_29 : f32 to vector<1x1024xf32>
    %85 = arith.mulf %83, %84 : vector<1x1024xf32>
    %cst_30 = arith.constant 1.000000e+00 : f32
    %86 = vector.broadcast %cst_30 : f32 to vector<1x1024xf32>
    %87 = arith.divf %86, %85 : vector<1x1024xf32>
    %88 = vector.extract_strided_slice %74 {offsets = [0, 0], sizes = [1, 1024], strides = [1, 1]} : vector<2x1024xf32> to vector<1x1024xf32>
    %89 = vector.extract_strided_slice %74 {offsets = [1, 0], sizes = [1, 1024], strides = [1, 1]} : vector<2x1024xf32> to vector<1x1024xf32>
    %90 = arith.mulf %88, %87 : vector<1x1024xf32>
    %cst_31 = arith.constant 2.000000e+00 : f32
    %91 = vector.broadcast %cst_31 : f32 to vector<1x1024xf32>
    %92 = arith.mulf %91, %90 : vector<1x1024xf32>
    %93 = arith.mulf %92, %88 : vector<1x1024xf32>
    %94 = arith.subf %89, %93 : vector<1x1024xf32>
    %95 = arith.mulf %94, %87 : vector<1x1024xf32>
    %96 = arith.mulf %90, %90 : vector<1x1024xf32>
    %97 = arith.addf %95, %96 : vector<1x1024xf32>
    %cst_32 = arith.constant 9.99999993E-9 : f32
    %98 = vector.broadcast %cst_32 : f32 to vector<1x1024xf32>
    %99 = arith.addf %97, %98 : vector<1x1024xf32>
    %100 = math.rsqrt %99 : vector<1x1024xf32>
    %101 = vector.broadcast %90 : vector<1x1024xf32> to vector<32x1024xf32>
    %102 = arith.subf %4, %101 : vector<32x1024xf32>
    %103 = vector.broadcast %100 : vector<1x1024xf32> to vector<32x1024xf32>
    %104 = arith.mulf %102, %103 : vector<32x1024xf32>
    %c0_33 = arith.constant 0 : index
    %c0_34 = arith.constant 0 : index
    %105 = vector.load %arg3[%c0_33, %c0_34] : memref<32x1xf32, #tpu.memory_space<vmem>>, vector<32x1xf32>
    %106 = vector.broadcast %105 : vector<32x1xf32> to vector<32x1024xf32>
    %107 = arith.mulf %104, %106 : vector<32x1024xf32>
    %c0_35 = arith.constant 0 : index
    %c0_36 = arith.constant 0 : index
    %108 = vector.load %arg4[%c0_35, %c0_36] : memref<32x1xf32, #tpu.memory_space<vmem>>, vector<32x1xf32>
    %109 = vector.broadcast %108 : vector<32x1xf32> to vector<32x1024xf32>
    %110 = arith.addf %107, %109 : vector<32x1024xf32>
    %c0_37 = arith.constant 0 : index
    %c0_38 = arith.constant 0 : index
    %c0_39 = arith.constant 0 : index
    %111 = vector.load %arg5[%c0_37, %c0_38, %c0_39] : memref<1x32x1024xf32, #tpu.memory_space<vmem>>, vector<1x32x1024xf32>
    %112 = vector.shape_cast %111 : vector<1x32x1024xf32> to vector<32x1024xf32>
    %113 = vector.shape_cast %110 : vector<32x1024xf32> to vector<1x32x1024xf32>
    tpu.vector_store %arg5[%c0_37, %c0_38, %c0_39], %113 {strides = array<i32>} : memref<1x32x1024xf32, #tpu.memory_space<vmem>>, vector<1x32x1024xf32>,
    return
  }
  func.func @transform_0(%arg0: i32, %arg1: i32) -> (i32, i32, i32) {
    %c0_i32 = arith.constant 0 : i32
    %c0_i32_0 = arith.constant 0 : i32
    return %arg0, %c0_i32, %arg1 : i32, i32, i32
  }
  func.func @transform_1(%arg0: i32, %arg1: i32) -> (i32, i32) {
    %c0_i32 = arith.constant 0 : i32
    %c0_i32_0 = arith.constant 0 : i32
    %c0_i32_1 = arith.constant 0 : i32
    return %c0_i32, %c0_i32_0 : i32, i32
  }
  func.func @transform_2(%arg0: i32, %arg1: i32) -> (i32, i32) {
    %c0_i32 = arith.constant 0 : i32
    %c0_i32_0 = arith.constant 0 : i32
    %c0_i32_1 = arith.constant 0 : i32
    return %c0_i32, %c0_i32_0 : i32, i32
  }
  func.func @transform_3(%arg0: i32, %arg1: i32) -> (i32, i32, i32) {
    %c0_i32 = arith.constant 0 : i32
    %c0_i32_0 = arith.constant 0 : i32
    return %arg0, %c0_i32, %arg1 : i32, i32, i32
  }
}

</mosaic_0001>

<llo_original>
// kernel: tpu_custom_call.1
$region0: #{tpu_custom_call.1}
  #allocation0 [shape = 'u32[]', space=smem, size = 0x4, offset = 0x4, fixed_abs, tag = 'smem constant byte address 0x4 - core index']
  #allocation1 [shape = 'u32[144,128]{1,0:T(1,128)}', space=vmem, size = 0x12000, scoped, tag = 'internal scratch']
  #allocation2 [shape = 'f32[2,1]{1,0:T(2,128)}', space=vmem, size = 0x400, scoped, tag = 'scratch operand']
  %s0 = inlined_call_operand.hbm [shape: f32[2,32,1024], index: 0, kind: input, shape index: {}]
  %s1 = inlined_call_operand.vmem [shape: f32[32,1], index: 1, kind: input, shape index: {}]
  %s2 = inlined_call_operand.vmem [shape: f32[32,1], index: 2, kind: input, shape index: {}]
  %s3 = inlined_call_operand.hbm [shape: f32[2,32,1024], index: 3, kind: output, shape index: {}]
  %s4 = sld [smem:[#allocation0]]
  $region53: #{tpu_custom_call.1} parent=0
    _
  %s6 = ssub.s32 1, %s4
  %s7 = scalar_select 0, %s6, %s4
  $region1: #{tpu_custom_call.1} parent=0
    #allocation3 [shape = 'u8[262144]{0}', space=vmem, size = 0x40000, scoped, tag = 'input window, operand 0']
    #allocation4 [shape = 's32[2]{0}', space=sflag, size = 0x8, scoped, tag = 'scoped memory for tpu_custom_call.1']
    #allocation5 [shape = 's32[2]{0}', space=sflag, size = 0x8, scoped, tag = 'scoped memory for tpu_custom_call.1']
    #allocation6 [shape = 'u8[262144]{0}', space=vmem, size = 0x40000, scoped, tag = 'output window, operand 0']
    %8 = vsyncpa [#allocation4], 0
    %s9 = scalar_lea.sflag [#allocation4], 1
    %10 = vsyncpa %s9, 0
    %11 = vsyncpa [#allocation5], 0
    %s12 = scalar_lea.sflag [#allocation5], 1
    %13 = vsyncpa %s12, 0
    loop: start=0, step=1, limit=4
    $region2: #{tpu_custom_call.1} parent=1 // loop_pre_header
      _
    $region3: #{tpu_custom_call.1} parent=1 // loop_header
      %s15 = sphi 0, %s19
      %p16 = scmp.ge.s32.totalorder %s15, 4
      %s22 = sphi 0, %s34
      %s23 = sphi 0, %s30
      %s24 = sphi 0, %s22
      %s25 = sphi 0, %s23
      %s26 = sphi 0, %s24
      %s27 = sphi 0, %s25
      %s39 = sphi 0, %s41
      %s42 = sphi 0, %s39
      %s43 = sphi 0, %s42
      %s59 = sphi 0, %s43
      %s63 = sphi 0, %s63
      %s65 = sphi 0, %s63
      %s66 = sphi 0, %s65
      %s80 = sphi 0, %s66
      %s84 = sphi 0, %s84
      %s86 = sphi 0, %s84
      %s87 = sphi 0, %s86
      %s101 = sphi 0, %s87
      %s109 = sphi 0, %s111
      %s112 = sphi 0, %s109
      %s113 = sphi 0, %s112
      %s129 = sphi 0, %s113
    $region4: #{tpu_custom_call.1} parent=1 // loop_header_branch
      %18 = sbr.rel (%p16) target = $region8
    $region5: #{tpu_custom_call.1} parent=1 // loop_body
      %s20 = ssub.s32 %s15, 1
      %s21 = ssub.s32 %s15, 2
      %s28 = sadd.s32 1, %s23
      %p29 = scmp.ge.s32.totalorder %s28, 1
      %s30 = scalar_select %p29, 0, %s28
      %s31 = sadd.s32 1, %s22
      %s32 = scalar_select %p29, %s31, %s22
      %p33 = scmp.ge.s32.totalorder %s32, 2
      %s34 = scalar_select %p33, 0, %s32
      %s35 = ssub.s32 %s22, %s34
      %s36 = ssub.s32 %s23, %s30
      %s37 = sor.u32 %s35, %s36
      %p38 = scmp.eq.s32.totalorder %s37, 0
      %s40 = sadd.s32 %s39, 1
      %s41 = scalar_select %p38, %s39, %s40
      %p44 = pneg %p38
      %p45 = scmp.eq.s32.totalorder %s15, 1
      %p46 = por %p44, %p45
      %p47 = scmp.ne.s32.totalorder %s39, %s42
      %p48 = scmp.eq.s32.totalorder %s15, 0
      %p49 = por %p47, %p48
      %p50 = scmp.ne.s32.totalorder %s39, %s42
      %p51 = scmp.eq.s32.totalorder %s20, 1
      %p52 = por %p50, %p51
      %p53 = scmp.ne.s32.totalorder %s42, %s43
      %p54 = scmp.eq.s32.totalorder %s20, 0
      %p55 = por %p53, %p54
      %p56 = scmp.ne.s32.totalorder %s42, %s43
      %p57 = scmp.eq.s32.totalorder %s21, 1
      %p58 = por %p56, %p57
      %p60 = scmp.ne.s32.totalorder %s43, %s59
      %p61 = scmp.eq.s32.totalorder %s21, 0
      %p62 = por %p60, %p61
      %s64 = sadd.s32 %s63, 1
      %p67 = scmp.eq.s32.totalorder %s15, 1
      %p68 = scmp.ne.s32.totalorder %s63, %s65
      %p69 = scmp.eq.s32.totalorder %s15, 0
      %p70 = por %p68, %p69
      %p71 = scmp.ne.s32.totalorder %s63, %s65
      %p72 = scmp.eq.s32.totalorder %s20, 1
      %p73 = por %p71, %p72
      %p74 = scmp.ne.s32.totalorder %s65, %s66
      %p75 = scmp.eq.s32.totalorder %s20, 0
      %p76 = por %p74, %p75
      %p77 = scmp.ne.s32.totalorder %s65, %s66
      %p78 = scmp.eq.s32.totalorder %s21, 1
      %p79 = por %p77, %p78
      %p81 = scmp.ne.s32.totalorder %s66, %s80
      %p82 = scmp.eq.s32.totalorder %s21, 0
      %p83 = por %p81, %p82
      %s85 = sadd.s32 %s84, 1
      %p88 = scmp.eq.s32.totalorder %s15, 1
      %p89 = scmp.ne.s32.totalorder %s84, %s86
      %p90 = scmp.eq.s32.totalorder %s15, 0
      %p91 = por %p89, %p90
      %p92 = scmp.ne.s32.totalorder %s84, %s86
      %p93 = scmp.eq.s32.totalorder %s20, 1
      %p94 = por %p92, %p93
      %p95 = scmp.ne.s32.totalorder %s86, %s87
      %p96 = scmp.eq.s32.totalorder %s20, 0
      %p97 = por %p95, %p96
      %p98 = scmp.ne.s32.totalorder %s86, %s87
      %p99 = scmp.eq.s32.totalorder %s21, 1
      %p100 = por %p98, %p99
      %p102 = scmp.ne.s32.totalorder %s87, %s101
      %p103 = scmp.eq.s32.totalorder %s21, 0
      %p104 = por %p102, %p103
      %s105 = ssub.s32 %s22, %s34
      %s106 = ssub.s32 %s23, %s30
      %s107 = sor.u32 %s105, %s106
      %p108 = scmp.eq.s32.totalorder %s107, 0
      %s110 = sadd.s32 %s109, 1
      %s111 = scalar_select %p108, %s109, %s110
      %p114 = pneg %p108
      %p115 = scmp.eq.s32.totalorder %s15, 1
      %p116 = por %p114, %p115
      %p117 = scmp.ne.s32.totalorder %s109, %s112
      %p118 = scmp.eq.s32.totalorder %s15, 0
      %p119 = por %p117, %p118
      %p120 = scmp.ne.s32.totalorder %s109, %s112
      %p121 = scmp.eq.s32.totalorder %s20, 1
      %p122 = por %p120, %p121
      %p123 = scmp.ne.s32.totalorder %s112, %s113
      %p124 = scmp.eq.s32.totalorder %s20, 0
      %p125 = por %p123, %p124
      %p126 = scmp.ne.s32.totalorder %s112, %s113
      %p127 = scmp.eq.s32.totalorder %s21, 1
      %p128 = por %p126, %p127
      %p130 = scmp.ne.s32.totalorder %s113, %s129
      %p131 = scmp.eq.s32.totalorder %s21, 0
      %p132 = por %p130, %p131
      %p133 = scmp.le.s32.totalorder 1, %s15
      %p134 = scmp.lt.s32.totalorder %s15, 3
      %p135 = pnand %p133, %p134
      %p136 = pneg %p135
      // Predicated region
      $region9: #{tpu_custom_call.1} parent=5 // pred_check
        _
      $region10: #{tpu_custom_call.1} parent=5 // pred_check_branch
        %138 = sbr.rel (%p135) target = $region12
      $region11: #{tpu_custom_call.1} parent=5 // pred_region
        %s139 = ssub.s32 %s15, 1
        // Predicated region
        $region13: #{tpu_custom_call.1} parent=11 // pred_check
          %p140 = pneg %p76
        $region14: #{tpu_custom_call.1} parent=11 // pred_check_branch
          %142 = sbr.rel (%p140) target = $region16
        $region15: #{tpu_custom_call.1} parent=11 // pred_region
          _
        $region16: #{tpu_custom_call.1} parent=11 // pred_fallthru
          _
        // Predicated region
        $region17: #{tpu_custom_call.1} parent=11 // pred_check
          %p143 = pneg %p97
        $region18: #{tpu_custom_call.1} parent=11 // pred_check_branch
          %145 = sbr.rel (%p143) target = $region20
        $region19: #{tpu_custom_call.1} parent=11 // pred_region
          _
        $region20: #{tpu_custom_call.1} parent=11 // pred_fallthru
          _
      $region12: #{tpu_custom_call.1} parent=5 // pred_fallthru
        _
      %p146 = scmp.lt.s32.totalorder %s15, 2
      // Predicated region
      $region21: #{tpu_custom_call.1} parent=5 // pred_check
        %p147 = pneg %p146
      $region22: #{tpu_custom_call.1} parent=5 // pred_check_branch
        %149 = sbr.rel (%p147) target = $region24
      $region23: #{tpu_custom_call.1} parent=5 // pred_region
        // Predicated region
        $region25: #{tpu_custom_call.1} parent=23 // pred_check
          %p150 = pneg %p49
        $region26: #{tpu_custom_call.1} parent=23 // pred_check_branch
          %152 = sbr.rel (%p150) target = $region28
        $region27: #{tpu_custom_call.1} parent=23 // pred_region
          %s153 = sand.u32 %s39, 1
          %s154 = scalar_lea.sflag [#allocation4], %s153
          %s155 = sand.u32 %s39, 1
          %s156 = smul.addr %s155, 256
          %s157 = scalar_lea.vmem [#allocation3], %s156
          %s158 = smul.u32 8, %s23
          %s160 = ssub.s32 4096, 4096
          %161 = vsyncadd %s154, %s160
          %s162 = smul.addr %s22, 32
          %s163 = sadd.s32 %s158, %s162
          %s164 = smul.addr %s163, 128
          %s165 = scalar_lea.hbm %s0, %s164
          %s166 = sshll.u32 %s157, 4
          %s167 = int_to_ptr.vmem [resolvable:$true] %s166
          %172 = dma.hbm_to_vmem [thread:$0]  %s165, 4096, %s167, %s154, 1024, 1024, 64
        $region28: #{tpu_custom_call.1} parent=23 // pred_fallthru
          _
      $region24: #{tpu_custom_call.1} parent=5 // pred_fallthru
        _
      %p173 = scmp.le.s32.totalorder 1, %s15
      %p174 = scmp.lt.s32.totalorder %s15, 3
      %p175 = pnand %p173, %p174
      %p176 = pneg %p175
      // Predicated region
      $region29: #{tpu_custom_call.1} parent=5 // pred_check
        _
      $region30: #{tpu_custom_call.1} parent=5 // pred_check_branch
        %178 = sbr.rel (%p175) target = $region32
      $region31: #{tpu_custom_call.1} parent=5 // pred_region
        %s179 = ssub.s32 %s15, 1
        %s180 = sand.u32 %s42, 1
        %s181 = scalar_lea.sflag [#allocation4], %s180
        %s182 = sand.u32 %s42, 1
        %s183 = smul.addr %s182, 256
        %s184 = scalar_lea.vmem [#allocation3], %s183
        // Predicated region
        $region33: #{tpu_custom_call.1} parent=31 // pred_check
          %p185 = pneg %p55
        $region34: #{tpu_custom_call.1} parent=31 // pred_check_branch
          %187 = sbr.rel (%p185) target = $region36
        $region35: #{tpu_custom_call.1} parent=31 // pred_region
          %188 = dma.done %s181, 4096
        $region36: #{tpu_custom_call.1} parent=31 // pred_fallthru
          _
        %s189 = sand.u32 %s42, 1
        %s190 = scalar_lea.sflag [#allocation4], %s189
        %s191 = sand.u32 %s42, 1
        %s192 = smul.addr %s191, 256
        %s193 = scalar_lea.vmem [#allocation3], %s192
        %p194 = pneg %p55
        %p195 = pneg %p52
        %p196 = pneg %p76
        %p197 = pneg %p73
        %p198 = pneg %p97
        %p199 = pneg %p94
        %p200 = pneg %p125
        %p201 = pneg %p122
        %s202 = sand.u32 %s112, 1
        %s203 = scalar_lea.sflag [#allocation5], %s202
        %s204 = sand.u32 %s112, 1
        %s205 = smul.addr %s204, 256
        %s206 = scalar_lea.vmem [#allocation6], %s205
        %s207 = smul.u32 8, %s25
        %s208 = smul.u32 8, %s25
        %p209 = scmp.eq.s32.totalorder %s25, 0
        // Predicated region
        $region37: #{tpu_custom_call.1} parent=31 // pred_check
          %p210 = pneg %p209
        $region38: #{tpu_custom_call.1} parent=31 // pred_check_branch
          %212 = sbr.rel (%p210) target = $region40
        $region39: #{tpu_custom_call.1} parent=31 // pred_region
          %vm213 = vcmask 1024
          %214 = vst.msk [vmem:[#allocation2] sm:$0x3] %vm213, 0.0
        $region40: #{tpu_custom_call.1} parent=31 // pred_fallthru
          _
        %v215 = vld [vmem:[%s184] sm:$0xff]
        %v216 = vld [vmem:[%s184 + $0x8] sm:$0xff]
        %v217 = vld [vmem:[%s184 + $0x10] sm:$0xff]
        %v218 = vld [vmem:[%s184 + $0x18] sm:$0xff]
        %v219 = vld [vmem:[%s184 + $0x20] sm:$0xff]
        %v220 = vld [vmem:[%s184 + $0x28] sm:$0xff]
        %v221 = vld [vmem:[%s184 + $0x30] sm:$0xff]
        %v222 = vld [vmem:[%s184 + $0x38] sm:$0xff]
        %v223 = vld [vmem:[%s184 + $0x40] sm:$0xff]
        %v224 = vld [vmem:[%s184 + $0x48] sm:$0xff]
        %v225 = vld [vmem:[%s184 + $0x50] sm:$0xff]
        %v226 = vld [vmem:[%s184 + $0x58] sm:$0xff]
        %v227 = vld [vmem:[%s184 + $0x60] sm:$0xff]
        %v228 = vld [vmem:[%s184 + $0x68] sm:$0xff]
        %v229 = vld [vmem:[%s184 + $0x70] sm:$0xff]
        %v230 = vld [vmem:[%s184 + $0x78] sm:$0xff]
        %v231 = vld [vmem:[%s184 + $0x80] sm:$0xff]
        %v232 = vld [vmem:[%s184 + $0x88] sm:$0xff]
        %v233 = vld [vmem:[%s184 + $0x90] sm:$0xff]
        %v234 = vld [vmem:[%s184 + $0x98] sm:$0xff]
        %v235 = vld [vmem:[%s184 + $0xa0] sm:$0xff]
        %v236 = vld [vmem:[%s184 + $0xa8] sm:$0xff]
        %v237 = vld [vmem:[%s184 + $0xb0] sm:$0xff]
        %v238 = vld [vmem:[%s184 + $0xb8] sm:$0xff]
        %v239 = vld [vmem:[%s184 + $0xc0] sm:$0xff]
        %v240 = vld [vmem:[%s184 + $0xc8] sm:$0xff]
        %v241 = vld [vmem:[%s184 + $0xd0] sm:$0xff]
        %v242 = vld [vmem:[%s184 + $0xd8] sm:$0xff]
        %v243 = vld [vmem:[%s184 + $0xe0] sm:$0xff]
        %v244 = vld [vmem:[%s184 + $0xe8] sm:$0xff]
        %v245 = vld [vmem:[%s184 + $0xf0] sm:$0xff]
        %v246 = vld [vmem:[%s184 + $0xf8] sm:$0xff]
        %v247 = vadd.f32 %v215, %v223
        %v248 = vadd.f32 %v247, %v231
        %v249 = vadd.f32 %v248, %v239
        %v250 = vrot.slane %v249, 4
        %v251 = vadd.f32 %v249, %v250
        %v252 = vrot.slane %v251, 2
        %v253 = vadd.f32 %v251, %v252
        %v254 = vrot.slane %v253, 1
        %v255 = vadd.f32 %v253, %v254
        %v256 = vadd.f32 %v216, %v224
        %v257 = vadd.f32 %v256, %v232
        %v258 = vadd.f32 %v257, %v240
        %v259 = vrot.slane %v258, 4
        %v260 = vadd.f32 %v258, %v259
        %v261 = vrot.slane %v260, 2
        %v262 = vadd.f32 %v260, %v261
        %v263 = vrot.slane %v262, 1
        %v264 = vadd.f32 %v262, %v263
        %v265 = vadd.f32 %v217, %v225
        %v266 = vadd.f32 %v265, %v233
        %v267 = vadd.f32 %v266, %v241
        %v268 = vrot.slane %v267, 4
        %v269 = vadd.f32 %v267, %v268
        %v270 = vrot.slane %v269, 2
        %v271 = vadd.f32 %v269, %v270
        %v272 = vrot.slane %v271, 1
        %v273 = vadd.f32 %v271, %v272
        %v274 = vadd.f32 %v218, %v226
        %v275 = vadd.f32 %v274, %v234
        %v276 = vadd.f32 %v275, %v242
        %v277 = vrot.slane %v276, 4
        %v278 = vadd.f32 %v276, %v277
        %v279 = vrot.slane %v278, 2
        %v280 = vadd.f32 %v278, %v279
        %v281 = vrot.slane %v280, 1
        %v282 = vadd.f32 %v280, %v281
        %v283 = vadd.f32 %v219, %v227
        %v284 = vadd.f32 %v283, %v235
        %v285 = vadd.f32 %v284, %v243
        %v286 = vrot.slane %v285, 4
        %v287 = vadd.f32 %v285, %v286
        %v288 = vrot.slane %v287, 2
        %v289 = vadd.f32 %v287, %v288
        %v290 = vrot.slane %v289, 1
        %v291 = vadd.f32 %v289, %v290
        %v292 = vadd.f32 %v220, %v228
        %v293 = vadd.f32 %v292, %v236
        %v294 = vadd.f32 %v293, %v244
        %v295 = vrot.slane %v294, 4
        %v296 = vadd.f32 %v294, %v295
        %v297 = vrot.slane %v296, 2
        %v298 = vadd.f32 %v296, %v297
        %v299 = vrot.slane %v298, 1
        %v300 = vadd.f32 %v298, %v299
        %v301 = vadd.f32 %v221, %v229
        %v302 = vadd.f32 %v301, %v237
        %v303 = vadd.f32 %v302, %v245
        %v304 = vrot.slane %v303, 4
        %v305 = vadd.f32 %v303, %v304
        %v306 = vrot.slane %v305, 2
        %v307 = vadd.f32 %v305, %v306
        %v308 = vrot.slane %v307, 1
        %v309 = vadd.f32 %v307, %v308
        %v310 = vadd.f32 %v222, %v230
        %v311 = vadd.f32 %v310, %v238
        %v312 = vadd.f32 %v311, %v246
        %v313 = vrot.slane %v312, 4
        %v314 = vadd.f32 %v312, %v313
        %v315 = vrot.slane %v314, 2
        %v316 = vadd.f32 %v314, %v315
        %v317 = vrot.slane %v316, 1
        %v318 = vadd.f32 %v316, %v317
        %v319 = vmul.f32 %v215, %v215
        %v320 = vmul.f32 %v216, %v216
        %v321 = vmul.f32 %v217, %v217
        %v322 = vmul.f32 %v218, %v218
        %v323 = vmul.f32 %v219, %v219
        %v324 = vmul.f32 %v220, %v220
        %v325 = vmul.f32 %v221, %v221
        %v326 = vmul.f32 %v222, %v222
        %v327 = vmul.f32 %v223, %v223
        %v328 = vmul.f32 %v224, %v224
        %v329 = vmul.f32 %v225, %v225
        %v330 = vmul.f32 %v226, %v226
        %v331 = vmul.f32 %v227, %v227
        %v332 = vmul.f32 %v228, %v228
        %v333 = vmul.f32 %v229, %v229
        %v334 = vmul.f32 %v230, %v230
        %v335 = vmul.f32 %v231, %v231
        %v336 = vmul.f32 %v232, %v232
        %v337 = vmul.f32 %v233, %v233
        %v338 = vmul.f32 %v234, %v234
        %v339 = vmul.f32 %v235, %v235
        %v340 = vmul.f32 %v236, %v236
        %v341 = vmul.f32 %v237, %v237
        %v342 = vmul.f32 %v238, %v238
        %v343 = vmul.f32 %v239, %v239
        %v344 = vmul.f32 %v240, %v240
        %v345 = vmul.f32 %v241, %v241
        %v346 = vmul.f32 %v242, %v242
        %v347 = vmul.f32 %v243, %v243
        %v348 = vmul.f32 %v244, %v244
        %v349 = vmul.f32 %v245, %v245
        %v350 = vmul.f32 %v246, %v246
        %v351 = vadd.f32 %v319, %v327
        %v352 = vadd.f32 %v351, %v335
        %v353 = vadd.f32 %v352, %v343
        %v354 = vrot.slane %v353, 4
        %v355 = vadd.f32 %v353, %v354
        %v356 = vrot.slane %v355, 2
        %v357 = vadd.f32 %v355, %v356
        %v358 = vrot.slane %v357, 1
        %v359 = vadd.f32 %v357, %v358
        %v360 = vadd.f32 %v320, %v328
        %v361 = vadd.f32 %v360, %v336
        %v362 = vadd.f32 %v361, %v344
        %v363 = vrot.slane %v362, 4
        %v364 = vadd.f32 %v362, %v363
        %v365 = vrot.slane %v364, 2
        %v366 = vadd.f32 %v364, %v365
        %v367 = vrot.slane %v366, 1
        %v368 = vadd.f32 %v366, %v367
        %v369 = vadd.f32 %v321, %v329
        %v370 = vadd.f32 %v369, %v337
        %v371 = vadd.f32 %v370, %v345
        %v372 = vrot.slane %v371, 4
        %v373 = vadd.f32 %v371, %v372
        %v374 = vrot.slane %v373, 2
        %v375 = vadd.f32 %v373, %v374
        %v376 = vrot.slane %v375, 1
        %v377 = vadd.f32 %v375, %v376
        %v378 = vadd.f32 %v322, %v330
        %v379 = vadd.f32 %v378, %v338
        %v380 = vadd.f32 %v379, %v346
        %v381 = vrot.slane %v380, 4
        %v382 = vadd.f32 %v380, %v381
        %v383 = vrot.slane %v382, 2
        %v384 = vadd.f32 %v382, %v383
        %v385 = vrot.slane %v384, 1
        %v386 = vadd.f32 %v384, %v385
        %v387 = vadd.f32 %v323, %v331
        %v388 = vadd.f32 %v387, %v339
        %v389 = vadd.f32 %v388, %v347
        %v390 = vrot.slane %v389, 4
        %v391 = vadd.f32 %v389, %v390
        %v392 = vrot.slane %v391, 2
        %v393 = vadd.f32 %v391, %v392
        %v394 = vrot.slane %v393, 1
        %v395 = vadd.f32 %v393, %v394
        %v396 = vadd.f32 %v324, %v332
        %v397 = vadd.f32 %v396, %v340
        %v398 = vadd.f32 %v397, %v348
        %v399 = vrot.slane %v398, 4
        %v400 = vadd.f32 %v398, %v399
        %v401 = vrot.slane %v400, 2
        %v402 = vadd.f32 %v400, %v401
        %v403 = vrot.slane %v402, 1
        %v404 = vadd.f32 %v402, %v403
        %v405 = vadd.f32 %v325, %v333
        %v406 = vadd.f32 %v405, %v341
        %v407 = vadd.f32 %v406, %v349
        %v408 = vrot.slane %v407, 4
        %v409 = vadd.f32 %v407, %v408
        %v410 = vrot.slane %v409, 2
        %v411 = vadd.f32 %v409, %v410
        %v412 = vrot.slane %v411, 1
        %v413 = vadd.f32 %v411, %v412
        %v414 = vadd.f32 %v326, %v334
        %v415 = vadd.f32 %v414, %v342
        %v416 = vadd.f32 %v415, %v350
        %v417 = vrot.slane %v416, 4
        %v418 = vadd.f32 %v416, %v417
        %v419 = vrot.slane %v418, 2
        %v420 = vadd.f32 %v418, %v419
        %v421 = vrot.slane %v420, 1
        %v422 = vadd.f32 %v420, %v421
        %vm423 = vcmask 1040384
        %v424 = vsel %vm423, %v255, %v359
        %v425 = vsel %vm423, %v264, %v368
        %v426 = vsel %vm423, %v273, %v377
        %v427 = vsel %vm423, %v282, %v386
        %v428 = vsel %vm423, %v291, %v395
        %v429 = vsel %vm423, %v300, %v404
        %v430 = vsel %vm423, %v309, %v413
        %v431 = vsel %vm423, %v318, %v422
        %v432 = vlaneseq
        %v433 = vand.u32 %v432, 127
        %v434 = vadd.s32 %v433, 128
        %v435 = vadd.s32 %v433, 256
        %v436 = vadd.s32 %v433, 384
        %v437 = vadd.s32 %v433, 512
        %v438 = vadd.s32 %v433, 640
        %v439 = vadd.s32 %v433, 768
        %v440 = vadd.s32 %v433, 896
        %441 = vrot.lane.b32.xlu0 %v424, 1
        %v442 = vpop.permute.xlu0 %441
        %443 = vrot.lane.b32.xlu0 %v425, 1
        %v444 = vpop.permute.xlu0 %443
        %445 = vrot.lane.b32.xlu0 %v426, 1
        %v446 = vpop.permute.xlu0 %445
        %447 = vrot.lane.b32.xlu0 %v427, 1
        %v448 = vpop.permute.xlu0 %447
        %449 = vrot.lane.b32.xlu0 %v428, 1
        %v450 = vpop.permute.xlu0 %449
        %451 = vrot.lane.b32.xlu0 %v429, 1
        %v452 = vpop.permute.xlu0 %451
        %453 = vrot.lane.b32.xlu0 %v430, 1
        %v454 = vpop.permute.xlu0 %453
        %455 = vrot.lane.b32.xlu0 %v431, 1
        %v456 = vpop.permute.xlu0 %455
        %vm457 = vcmp.lt.s32.totalorder %v433, 1
        %v458 = vsel %vm457, %v454, %v456
        %v459 = vsel %vm457, %v452, %v454
        %v460 = vsel %vm457, %v450, %v452
        %v461 = vsel %vm457, %v448, %v450
        %v462 = vsel %vm457, %v446, %v448
        %v463 = vsel %vm457, %v444, %v446
        %v464 = vsel %vm457, %v442, %v444
        %v465 = vsel %vm457, %v456, %v442
        %vm466 = vcmp.ge.s32.totalorder %v433, 1
        %vm467 = vcmp.ge.s32.totalorder %v434, 1
        %vm468 = vcmp.ge.s32.totalorder %v435, 1
        %vm469 = vcmp.ge.s32.totalorder %v436, 1
        %vm470 = vcmp.ge.s32.totalorder %v437, 1
        %vm471 = vcmp.ge.s32.totalorder %v438, 1
        %vm472 = vcmp.ge.s32.totalorder %v439, 1
        %vm473 = vcmp.ge.s32.totalorder %v440, 1
        %v474 = vsel %vm466, %v465, 0.0
        %v475 = vsel %vm467, %v464, 0.0
        %v476 = vsel %vm468, %v463, 0.0
        %v477 = vsel %vm469, %v462, 0.0
        %v478 = vsel %vm470, %v461, 0.0
        %v479 = vsel %vm471, %v460, 0.0
        %v480 = vsel %vm472, %v459, 0.0
        %v481 = vsel %vm473, %v458, 0.0
        %v482 = vadd.f32 %v424, %v474
        %v483 = vadd.f32 %v425, %v475
        %v484 = vadd.f32 %v426, %v476
        %v485 = vadd.f32 %v427, %v477
        %v486 = vadd.f32 %v428, %v478
        %v487 = vadd.f32 %v429, %v479
        %v488 = vadd.f32 %v430, %v480
        %v489 = vadd.f32 %v431, %v481
        %490 = vrot.lane.b32.xlu0 %v482, 2
        %v491 = vpop.permute.xlu0 %490
        %492 = vrot.lane.b32.xlu0 %v483, 2
        %v493 = vpop.permute.xlu0 %492
        %494 = vrot.lane.b32.xlu0 %v484, 2
        %v495 = vpop.permute.xlu0 %494
        %496 = vrot.lane.b32.xlu0 %v485, 2
        %v497 = vpop.permute.xlu0 %496
        %498 = vrot.lane.b32.xlu0 %v486, 2
        %v499 = vpop.permute.xlu0 %498
        %500 = vrot.lane.b32.xlu0 %v487, 2
        %v501 = vpop.permute.xlu0 %500
        %502 = vrot.lane.b32.xlu0 %v488, 2
        %v503 = vpop.permute.xlu0 %502
        %504 = vrot.lane.b32.xlu0 %v489, 2
        %v505 = vpop.permute.xlu0 %504
        %vm506 = vcmp.lt.s32.totalorder %v433, 2
        %v507 = vsel %vm506, %v503, %v505
        %v508 = vsel %vm506, %v501, %v503
        %v509 = vsel %vm506, %v499, %v501
        %v510 = vsel %vm506, %v497, %v499
        %v511 = vsel %vm506, %v495, %v497
        %v512 = vsel %vm506, %v493, %v495
        %v513 = vsel %vm506, %v491, %v493
        %v514 = vsel %vm506, %v505, %v491
        %vm515 = vcmp.ge.s32.totalorder %v433, 2
        %vm516 = vcmp.ge.s32.totalorder %v434, 2
        %vm517 = vcmp.ge.s32.totalorder %v435, 2
        %vm518 = vcmp.ge.s32.totalorder %v436, 2
        %vm519 = vcmp.ge.s32.totalorder %v437, 2
        %vm520 = vcmp.ge.s32.totalorder %v438, 2
        %vm521 = vcmp.ge.s32.totalorder %v439, 2
        %vm522 = vcmp.ge.s32.totalorder %v440, 2
        %v523 = vsel %vm515, %v514, 0.0
        %v524 = vsel %vm516, %v513, 0.0
        %v525 = vsel %vm517, %v512, 0.0
        %v526 = vsel %vm518, %v511, 0.0
        %v527 = vsel %vm519, %v510, 0.0
        %v528 = vsel %vm520, %v509, 0.0
        %v529 = vsel %vm521, %v508, 0.0
        %v530 = vsel %vm522, %v507, 0.0
        %v531 = vadd.f32 %v482, %v523
        %v532 = vadd.f32 %v483, %v524
        %v533 = vadd.f32 %v484, %v525
        %v534 = vadd.f32 %v485, %v526
        %v535 = vadd.f32 %v486, %v527
        %v536 = vadd.f32 %v487, %v528
        %v537 = vadd.f32 %v488, %v529
        %v538 = vadd.f32 %v489, %v530
        %539 = vrot.lane.b32.xlu0 %v531, 4
        %v540 = vpop.permute.xlu0 %539
        %541 = vrot.lane.b32.xlu0 %v532, 4
        %v542 = vpop.permute.xlu0 %541
        %543 = vrot.lane.b32.xlu0 %v533, 4
        %v544 = vpop.permute.xlu0 %543
        %545 = vrot.lane.b32.xlu0 %v534, 4
        %v546 = vpop.permute.xlu0 %545
        %547 = vrot.lane.b32.xlu0 %v535, 4
        %v548 = vpop.permute.xlu0 %547
        %549 = vrot.lane.b32.xlu0 %v536, 4
        %v550 = vpop.permute.xlu0 %549
        %551 = vrot.lane.b32.xlu0 %v537, 4
        %v552 = vpop.permute.xlu0 %551
        %553 = vrot.lane.b32.xlu0 %v538, 4
        %v554 = vpop.permute.xlu0 %553
        %vm555 = vcmp.lt.s32.totalorder %v433, 4
        %v556 = vsel %vm555, %v552, %v554
        %v557 = vsel %vm555, %v550, %v552
        %v558 = vsel %vm555, %v548, %v550
        %v559 = vsel %vm555, %v546, %v548
        %v560 = vsel %vm555, %v544, %v546
        %v561 = vsel %vm555, %v542, %v544
        %v562 = vsel %vm555, %v540, %v542
        %v563 = vsel %vm555, %v554, %v540
        %vm564 = vcmp.ge.s32.totalorder %v433, 4
        %vm565 = vcmp.ge.s32.totalorder %v434, 4
        %vm566 = vcmp.ge.s32.totalorder %v435, 4
        %vm567 = vcmp.ge.s32.totalorder %v436, 4
        %vm568 = vcmp.ge.s32.totalorder %v437, 4
        %vm569 = vcmp.ge.s32.totalorder %v438, 4
        %vm570 = vcmp.ge.s32.totalorder %v439, 4
        %vm571 = vcmp.ge.s32.totalorder %v440, 4
        %v572 = vsel %vm564, %v563, 0.0
        %v573 = vsel %vm565, %v562, 0.0
        %v574 = vsel %vm566, %v561, 0.0
        %v575 = vsel %vm567, %v560, 0.0
        %v576 = vsel %vm568, %v559, 0.0
        %v577 = vsel %vm569, %v558, 0.0
        %v578 = vsel %vm570, %v557, 0.0
        %v579 = vsel %vm571, %v556, 0.0
        %v580 = vadd.f32 %v531, %v572
        %v581 = vadd.f32 %v532, %v573
        %v582 = vadd.f32 %v533, %v574
        %v583 = vadd.f32 %v534, %v575
        %v584 = vadd.f32 %v535, %v576
        %v585 = vadd.f32 %v536, %v577
        %v586 = vadd.f32 %v537, %v578
        %v587 = vadd.f32 %v538, %v579
        %588 = vrot.lane.b32.xlu0 %v580, 8
        %v589 = vpop.permute.xlu0 %588
        %590 = vrot.lane.b32.xlu0 %v581, 8
        %v591 = vpop.permute.xlu0 %590
        %592 = vrot.lane.b32.xlu0 %v582, 8
        %v593 = vpop.permute.xlu0 %592
        %594 = vrot.lane.b32.xlu0 %v583, 8
        %v595 = vpop.permute.xlu0 %594
        %596 = vrot.lane.b32.xlu0 %v584, 8
        %v597 = vpop.permute.xlu0 %596
        %598 = vrot.lane.b32.xlu0 %v585, 8
        %v599 = vpop.permute.xlu0 %598
        %600 = vrot.lane.b32.xlu0 %v586, 8
        %v601 = vpop.permute.xlu0 %600
        %602 = vrot.lane.b32.xlu0 %v587, 8
        %v603 = vpop.permute.xlu0 %602
        %vm604 = vcmp.lt.s32.totalorder %v433, 8
        %v605 = vsel %vm604, %v601, %v603
        %v606 = vsel %vm604, %v599, %v601
        %v607 = vsel %vm604, %v597, %v599
        %v608 = vsel %vm604, %v595, %v597
        %v609 = vsel %vm604, %v593, %v595
        %v610 = vsel %vm604, %v591, %v593
        %v611 = vsel %vm604, %v589, %v591
        %v612 = vsel %vm604, %v603, %v589
        %vm613 = vcmp.ge.s32.totalorder %v433, 8
        %vm614 = vcmp.ge.s32.totalorder %v434, 8
        %vm615 = vcmp.ge.s32.totalorder %v435, 8
        %vm616 = vcmp.ge.s32.totalorder %v436, 8
        %vm617 = vcmp.ge.s32.totalorder %v437, 8
        %vm618 = vcmp.ge.s32.totalorder %v438, 8
        %vm619 = vcmp.ge.s32.totalorder %v439, 8
        %vm620 = vcmp.ge.s32.totalorder %v440, 8
        %v621 = vsel %vm613, %v612, 0.0
        %v622 = vsel %vm614, %v611, 0.0
        %v623 = vsel %vm615, %v610, 0.0
        %v624 = vsel %vm616, %v609, 0.0
        %v625 = vsel %vm617, %v608, 0.0
        %v626 = vsel %vm618, %v607, 0.0
        %v627 = vsel %vm619, %v606, 0.0
        %v628 = vsel %vm620, %v605, 0.0
        %v629 = vadd.f32 %v580, %v621
        %v630 = vadd.f32 %v581, %v622
        %v631 = vadd.f32 %v582, %v623
        %v632 = vadd.f32 %v583, %v624
        %v633 = vadd.f32 %v584, %v625
        %v634 = vadd.f32 %v585, %v626
        %v635 = vadd.f32 %v586, %v627
        %v636 = vadd.f32 %v587, %v628
        %637 = vrot.lane.b32.xlu0 %v629, 16
        %v638 = vpop.permute.xlu0 %637
        %639 = vrot.lane.b32.xlu0 %v630, 16
        %v640 = vpop.permute.xlu0 %639
        %641 = vrot.lane.b32.xlu0 %v631, 16
        %v642 = vpop.permute.xlu0 %641
        %643 = vrot.lane.b32.xlu0 %v632, 16
        %v644 = vpop.permute.xlu0 %643
        %645 = vrot.lane.b32.xlu0 %v633, 16
        %v646 = vpop.permute.xlu0 %645
        %647 = vrot.lane.b32.xlu0 %v634, 16
        %v648 = vpop.permute.xlu0 %647
        %649 = vrot.lane.b32.xlu0 %v635, 16
        %v650 = vpop.permute.xlu0 %649
        %651 = vrot.lane.b32.xlu0 %v636, 16
        %v652 = vpop.permute.xlu0 %651
        %vm653 = vcmp.lt.s32.totalorder %v433, 16
        %v654 = vsel %vm653, %v650, %v652
        %v655 = vsel %vm653, %v648, %v650
        %v656 = vsel %vm653, %v646, %v648
        %v657 = vsel %vm653, %v644, %v646
        %v658 = vsel %vm653, %v642, %v644
        %v659 = vsel %vm653, %v640, %v642
        %v660 = vsel %vm653, %v638, %v640
        %v661 = vsel %vm653, %v652, %v638
        %vm662 = vcmp.ge.s32.totalorder %v433, 16
        %vm663 = vcmp.ge.s32.totalorder %v434, 16
        %vm664 = vcmp.ge.s32.totalorder %v435, 16
        %vm665 = vcmp.ge.s32.totalorder %v436, 16
        %vm666 = vcmp.ge.s32.totalorder %v437, 16
        %vm667 = vcmp.ge.s32.totalorder %v438, 16
        %vm668 = vcmp.ge.s32.totalorder %v439, 16
        %vm669 = vcmp.ge.s32.totalorder %v440, 16
        %v670 = vsel %vm662, %v661, 0.0
        %v671 = vsel %vm663, %v660, 0.0
        %v672 = vsel %vm664, %v659, 0.0
        %v673 = vsel %vm665, %v658, 0.0
        %v674 = vsel %vm666, %v657, 0.0
        %v675 = vsel %vm667, %v656, 0.0
        %v676 = vsel %vm668, %v655, 0.0
        %v677 = vsel %vm669, %v654, 0.0
        %v678 = vadd.f32 %v629, %v670
        %v679 = vadd.f32 %v630, %v671
        %v680 = vadd.f32 %v631, %v672
        %v681 = vadd.f32 %v632, %v673
        %v682 = vadd.f32 %v633, %v674
        %v683 = vadd.f32 %v634, %v675
        %v684 = vadd.f32 %v635, %v676
        %v685 = vadd.f32 %v636, %v677
        %686 = vrot.lane.b32.xlu0 %v678, 32
        %v687 = vpop.permute.xlu0 %686
        %688 = vrot.lane.b32.xlu0 %v679, 32
        %v689 = vpop.permute.xlu0 %688
        %690 = vrot.lane.b32.xlu0 %v680, 32
        %v691 = vpop.permute.xlu0 %690
        %692 = vrot.lane.b32.xlu0 %v681, 32
        %v693 = vpop.permute.xlu0 %692
        %694 = vrot.lane.b32.xlu0 %v682, 32
        %v695 = vpop.permute.xlu0 %694
        %696 = vrot.lane.b32.xlu0 %v683, 32
        %v697 = vpop.permute.xlu0 %696
        %698 = vrot.lane.b32.xlu0 %v684, 32
        %v699 = vpop.permute.xlu0 %698
        %700 = vrot.lane.b32.xlu0 %v685, 32
        %v701 = vpop.permute.xlu0 %700
        %vm702 = vcmp.lt.s32.totalorder %v433, 32
        %v703 = vsel %vm702, %v699, %v701
        %v704 = vsel %vm702, %v697, %v699
        %v705 = vsel %vm702, %v695, %v697
        %v706 = vsel %vm702, %v693, %v695
        %v707 = vsel %vm702, %v691, %v693
        %v708 = vsel %vm702, %v689, %v691
        %v709 = vsel %vm702, %v687, %v689
        %v710 = vsel %vm702, %v701, %v687
        %vm711 = vcmp.ge.s32.totalorder %v433, 32
        %vm712 = vcmp.ge.s32.totalorder %v434, 32
        %vm713 = vcmp.ge.s32.totalorder %v435, 32
        %vm714 = vcmp.ge.s32.totalorder %v436, 32
        %vm715 = vcmp.ge.s32.totalorder %v437, 32
        %vm716 = vcmp.ge.s32.totalorder %v438, 32
        %vm717 = vcmp.ge.s32.totalorder %v439, 32
        %vm718 = vcmp.ge.s32.totalorder %v440, 32
        %v719 = vsel %vm711, %v710, 0.0
        %v720 = vsel %vm712, %v709, 0.0
        %v721 = vsel %vm713, %v708, 0.0
        %v722 = vsel %vm714, %v707, 0.0
        %v723 = vsel %vm715, %v706, 0.0
        %v724 = vsel %vm716, %v705, 0.0
        %v725 = vsel %vm717, %v704, 0.0
        %v726 = vsel %vm718, %v703, 0.0
        %v727 = vadd.f32 %v678, %v719
        %v728 = vadd.f32 %v679, %v720
        %v729 = vadd.f32 %v680, %v721
        %v730 = vadd.f32 %v681, %v722
        %v731 = vadd.f32 %v682, %v723
        %v732 = vadd.f32 %v683, %v724
        %v733 = vadd.f32 %v684, %v725
        %v734 = vadd.f32 %v685, %v726
        %735 = vrot.lane.b32.xlu0 %v727, 64
        %v736 = vpop.permute.xlu0 %735
        %737 = vrot.lane.b32.xlu0 %v728, 64
        %v738 = vpop.permute.xlu0 %737
        %739 = vrot.lane.b32.xlu0 %v729, 64
        %v740 = vpop.permute.xlu0 %739
        %741 = vrot.lane.b32.xlu0 %v730, 64
        %v742 = vpop.permute.xlu0 %741
        %743 = vrot.lane.b32.xlu0 %v731, 64
        %v744 = vpop.permute.xlu0 %743
        %745 = vrot.lane.b32.xlu0 %v732, 64
        %v746 = vpop.permute.xlu0 %745
        %747 = vrot.lane.b32.xlu0 %v733, 64
        %v748 = vpop.permute.xlu0 %747
        %749 = vrot.lane.b32.xlu0 %v734, 64
        %v750 = vpop.permute.xlu0 %749
        %vm751 = vcmp.lt.s32.totalorder %v433, 64
        %v752 = vsel %vm751, %v748, %v750
        %v753 = vsel %vm751, %v746, %v748
        %v754 = vsel %vm751, %v744, %v746
        %v755 = vsel %vm751, %v742, %v744
        %v756 = vsel %vm751, %v740, %v742
        %v757 = vsel %vm751, %v738, %v740
        %v758 = vsel %vm751, %v736, %v738
        %v759 = vsel %vm751, %v750, %v736
        %vm760 = vcmp.ge.s32.totalorder %v433, 64
        %vm761 = vcmp.ge.s32.totalorder %v434, 64
        %vm762 = vcmp.ge.s32.totalorder %v435, 64
        %vm763 = vcmp.ge.s32.totalorder %v436, 64
        %vm764 = vcmp.ge.s32.totalorder %v437, 64
        %vm765 = vcmp.ge.s32.totalorder %v438, 64
        %vm766 = vcmp.ge.s32.totalorder %v439, 64
        %vm767 = vcmp.ge.s32.totalorder %v440, 64
        %v768 = vsel %vm760, %v759, 0.0
        %v769 = vsel %vm761, %v758, 0.0
        %v770 = vsel %vm762, %v757, 0.0
        %v771 = vsel %vm763, %v756, 0.0
        %v772 = vsel %vm764, %v755, 0.0
        %v773 = vsel %vm765, %v754, 0.0
        %v774 = vsel %vm766, %v753, 0.0
        %v775 = vsel %vm767, %v752, 0.0
        %v776 = vadd.f32 %v727, %v768
        %v777 = vadd.f32 %v728, %v769
        %v778 = vadd.f32 %v729, %v770
        %v779 = vadd.f32 %v730, %v771
        %v780 = vadd.f32 %v731, %v772
        %v781 = vadd.f32 %v732, %v773
        %v782 = vadd.f32 %v733, %v774
        %v783 = vadd.f32 %v734, %v775
        %vm784 = vcmp.ge.s32.totalorder %v433, 128
        %vm785 = vcmp.ge.s32.totalorder %v434, 128
        %vm786 = vcmp.ge.s32.totalorder %v435, 128
        %vm787 = vcmp.ge.s32.totalorder %v436, 128
        %vm788 = vcmp.ge.s32.totalorder %v437, 128
        %vm789 = vcmp.ge.s32.totalorder %v438, 128
        %vm790 = vcmp.ge.s32.totalorder %v439, 128
        %vm791 = vcmp.ge.s32.totalorder %v440, 128
        %v792 = vsel %vm784, %v783, 0.0
        %v793 = vsel %vm785, %v776, 0.0
        %v794 = vsel %vm786, %v777, 0.0
        %v795 = vsel %vm787, %v778, 0.0
        %v796 = vsel %vm788, %v779, 0.0
        %v797 = vsel %vm789, %v780, 0.0
        %v798 = vsel %vm790, %v781, 0.0
        %v799 = vsel %vm791, %v782, 0.0
        %v800 = vadd.f32 %v776, %v792
        %v801 = vadd.f32 %v777, %v793
        %v802 = vadd.f32 %v778, %v794
        %v803 = vadd.f32 %v779, %v795
        %v804 = vadd.f32 %v780, %v796
        %v805 = vadd.f32 %v781, %v797
        %v806 = vadd.f32 %v782, %v798
        %v807 = vadd.f32 %v783, %v799
        %vm808 = vcmp.ge.s32.totalorder %v433, 256
        %vm809 = vcmp.ge.s32.totalorder %v434, 256
        %vm810 = vcmp.ge.s32.totalorder %v435, 256
        %vm811 = vcmp.ge.s32.totalorder %v436, 256
        %vm812 = vcmp.ge.s32.totalorder %v437, 256
        %vm813 = vcmp.ge.s32.totalorder %v438, 256
        %vm814 = vcmp.ge.s32.totalorder %v439, 256
        %vm815 = vcmp.ge.s32.totalorder %v440, 256
        %v816 = vsel %vm808, %v806, 0.0
        %v817 = vsel %vm809, %v807, 0.0
        %v818 = vsel %vm810, %v800, 0.0
        %v819 = vsel %vm811, %v801, 0.0
        %v820 = vsel %vm812, %v802, 0.0
        %v821 = vsel %vm813, %v803, 0.0
        %v822 = vsel %vm814, %v804, 0.0
        %v823 = vsel %vm815, %v805, 0.0
        %v824 = vadd.f32 %v800, %v816
        %v825 = vadd.f32 %v801, %v817
        %v826 = vadd.f32 %v802, %v818
        %v827 = vadd.f32 %v803, %v819
        %v828 = vadd.f32 %v804, %v820
        %v829 = vadd.f32 %v805, %v821
        %v830 = vadd.f32 %v806, %v822
        %v831 = vadd.f32 %v807, %v823
        %vm832 = vcmp.ge.s32.totalorder %v433, 512
        %vm833 = vcmp.ge.s32.totalorder %v434, 512
        %vm834 = vcmp.ge.s32.totalorder %v435, 512
        %vm835 = vcmp.ge.s32.totalorder %v436, 512
        %vm836 = vcmp.ge.s32.totalorder %v437, 512
        %vm837 = vcmp.ge.s32.totalorder %v438, 512
        %vm838 = vcmp.ge.s32.totalorder %v439, 512
        %vm839 = vcmp.ge.s32.totalorder %v440, 512
        %v840 = vsel %vm832, %v828, 0.0
        %v841 = vsel %vm833, %v829, 0.0
        %v842 = vsel %vm834, %v830, 0.0
        %v843 = vsel %vm835, %v831, 0.0
        %v844 = vsel %vm836, %v824, 0.0
        %v845 = vsel %vm837, %v825, 0.0
        %v846 = vsel %vm838, %v826, 0.0
        %v847 = vsel %vm839, %v827, 0.0
        %v848 = vadd.f32 %v824, %v840
        %v849 = vadd.f32 %v825, %v841
        %v850 = vadd.f32 %v826, %v842
        %v851 = vadd.f32 %v827, %v843
        %v852 = vadd.f32 %v828, %v844
        %v853 = vadd.f32 %v829, %v845
        %v854 = vadd.f32 %v830, %v846
        %v855 = vadd.f32 %v831, %v847
        %v856 = vld [vmem:[#allocation2] sm:$0x3]
        %858 = vset.pattern.permute.xlu0 0
        %859 = vperm.xlu0 %858, %v856
        %v860 = vpop.permute.xlu0 %859
        %v862 = vadd.f32 %v848, %v860
        %v863 = vadd.f32 %v849, %v860
        %v864 = vadd.f32 %v850, %v860
        %v865 = vadd.f32 %v851, %v860
        %v866 = vadd.f32 %v852, %v860
        %v867 = vadd.f32 %v853, %v860
        %v868 = vadd.f32 %v854, %v860
        %v869 = vadd.f32 %v855, %v860
        %871 = vrot.lane.b32.xlu0 %v869, 1
        %v872 = vpop.permute.xlu0 %871
        %vm874 = vcmask 1024
        %875 = vst.msk [vmem:[#allocation2] sm:$0x3] %vm874, %v872
        %v876 = vcvt.s32.f32 %v433
        %v877 = vcvt.s32.f32 %v434
        %v878 = vcvt.s32.f32 %v435
        %v879 = vcvt.s32.f32 %v436
        %v880 = vcvt.s32.f32 %v437
        %v881 = vcvt.s32.f32 %v438
        %v882 = vcvt.s32.f32 %v439
        %v883 = vcvt.s32.f32 %v440
        %s884 = smul.u32 %s25, 1024
        %s885 = sadd.s32 %s884, 1
        %s886 = scvt.s32.f32 %s885
        %v887 = vstv %s886
        %v888 = vadd.f32 %v876, %v887
        %v889 = vadd.f32 %v877, %v887
        %v890 = vadd.f32 %v878, %v887
        %v891 = vadd.f32 %v879, %v887
        %v892 = vadd.f32 %v880, %v887
        %v893 = vadd.f32 %v881, %v887
        %v894 = vadd.f32 %v882, %v887
        %v895 = vadd.f32 %v883, %v887
        %v896 = vmul.f32 %v888, 32.0
        %v897 = vmul.f32 %v889, 32.0
        %v898 = vmul.f32 %v890, 32.0
        %v899 = vmul.f32 %v891, 32.0
        %v900 = vmul.f32 %v892, 32.0
        %v901 = vmul.f32 %v893, 32.0
        %v902 = vmul.f32 %v894, 32.0
        %v903 = vmul.f32 %v895, 32.0
        %v904 = vrcp.pop %v896
        %v905 = vmul.f32 1.0, %v904
        %v906 = vrcp.pop %v897
        %v907 = vmul.f32 1.0, %v906
        %v908 = vrcp.pop %v898
        %v909 = vmul.f32 1.0, %v908
        %v910 = vrcp.pop %v899
        %v911 = vmul.f32 1.0, %v910
        %v912 = vrcp.pop %v900
        %v913 = vmul.f32 1.0, %v912
        %v914 = vrcp.pop %v901
        %v915 = vmul.f32 1.0, %v914
        %v916 = vrcp.pop %v902
        %v917 = vmul.f32 1.0, %v916
        %v918 = vrcp.pop %v903
        %v919 = vmul.f32 1.0, %v918
        %v920 = vmul.f32 %v862, %v905
        %v921 = vmul.f32 %v863, %v907
        %v922 = vmul.f32 %v864, %v909
        %v923 = vmul.f32 %v865, %v911
        %v924 = vmul.f32 %v866, %v913
        %v925 = vmul.f32 %v867, %v915
        %v926 = vmul.f32 %v868, %v917
        %v927 = vmul.f32 %v869, %v919
        %v928 = vmul.f32 %v920, 2.0
        %v929 = vmul.f32 %v921, 2.0
        %v930 = vmul.f32 %v922, 2.0
        %v931 = vmul.f32 %v923, 2.0
        %v932 = vmul.f32 %v924, 2.0
        %v933 = vmul.f32 %v925, 2.0
        %v934 = vmul.f32 %v926, 2.0
        %v935 = vmul.f32 %v927, 2.0
        %v936 = vmul.f32 %v928, %v862
        %v937 = vmul.f32 %v929, %v863
        %v938 = vmul.f32 %v930, %v864
        %v939 = vmul.f32 %v931, %v865
        %v940 = vmul.f32 %v932, %v866
        %v941 = vmul.f32 %v933, %v867
        %v942 = vmul.f32 %v934, %v868
        %v943 = vmul.f32 %v935, %v869
        %v952 = vrot.slane %v936, 7
        %v953 = vrot.slane %v937, 7
        %v954 = vrot.slane %v938, 7
        %v955 = vrot.slane %v939, 7
        %v956 = vrot.slane %v940, 7
        %v957 = vrot.slane %v941, 7
        %v958 = vrot.slane %v942, 7
        %v959 = vrot.slane %v943, 7
        %v968 = vsub.f32 %v862, %v952
        %v969 = vsub.f32 %v863, %v953
        %v970 = vsub.f32 %v864, %v954
        %v971 = vsub.f32 %v865, %v955
        %v972 = vsub.f32 %v866, %v956
        %v973 = vsub.f32 %v867, %v957
        %v974 = vsub.f32 %v868, %v958
        %v975 = vsub.f32 %v869, %v959
        %v976 = vmul.f32 %v968, %v905
        %v977 = vmul.f32 %v969, %v907
        %v978 = vmul.f32 %v970, %v909
        %v979 = vmul.f32 %v971, %v911
        %v980 = vmul.f32 %v972, %v913
        %v981 = vmul.f32 %v973, %v915
        %v982 = vmul.f32 %v974, %v917
        %v983 = vmul.f32 %v975, %v919
        %v984 = vmul.f32 %v920, %v920
        %v985 = vmul.f32 %v921, %v921
        %v986 = vmul.f32 %v922, %v922
        %v987 = vmul.f32 %v923, %v923
        %v988 = vmul.f32 %v924, %v924
        %v989 = vmul.f32 %v925, %v925
        %v990 = vmul.f32 %v926, %v926
        %v991 = vmul.f32 %v927, %v927
        %v1000 = vrot.slane %v984, 7
        %v1001 = vrot.slane %v985, 7
        %v1002 = vrot.slane %v986, 7
        %v1003 = vrot.slane %v987, 7
        %v1004 = vrot.slane %v988, 7
        %v1005 = vrot.slane %v989, 7
        %v1006 = vrot.slane %v990, 7
        %v1007 = vrot.slane %v991, 7
        %v1016 = vadd.f32 %v976, %v1000
        %v1017 = vadd.f32 %v977, %v1001
        %v1018 = vadd.f32 %v978, %v1002
        %v1019 = vadd.f32 %v979, %v1003
        %v1020 = vadd.f32 %v980, %v1004
        %v1021 = vadd.f32 %v981, %v1005
        %v1022 = vadd.f32 %v982, %v1006
        %v1023 = vadd.f32 %v983, %v1007
        %v1024 = vadd.f32 %v1016, 1e-08
        %v1025 = vadd.f32 %v1017, 1e-08
        %v1026 = vadd.f32 %v1018, 1e-08
        %v1027 = vadd.f32 %v1019, 1e-08
        %v1028 = vadd.f32 %v1020, 1e-08
        %v1029 = vadd.f32 %v1021, 1e-08
        %v1030 = vadd.f32 %v1022, 1e-08
        %v1031 = vadd.f32 %v1023, 1e-08
        %v1032 = vrsqrt.pop %v1024
        %v1033 = vrsqrt.pop %v1025
        %v1034 = vrsqrt.pop %v1026
        %v1035 = vrsqrt.pop %v1027
        %v1036 = vrsqrt.pop %v1028
        %v1037 = vrsqrt.pop %v1029
        %v1038 = vrsqrt.pop %v1030
        %v1039 = vrsqrt.pop %v1031
        %v1040 = vlaneseq
        %v1041 = vshrl.u32 %v1040, 7
        %v1042 = vsub.s32 0, %v1041
        %v1043 = vrot.slane %v920, %v1042
        %v1044 = vlaneseq
        %v1045 = vshrl.u32 %v1044, 7
        %v1046 = vsub.s32 0, %v1045
        %v1047 = vrot.slane %v921, %v1046
        %v1048 = vlaneseq
        %v1049 = vshrl.u32 %v1048, 7
        %v1050 = vsub.s32 0, %v1049
        %v1051 = vrot.slane %v922, %v1050
        %v1052 = vlaneseq
        %v1053 = vshrl.u32 %v1052, 7
        %v1054 = vsub.s32 0, %v1053
        %v1055 = vrot.slane %v923, %v1054
        %v1056 = vlaneseq
        %v1057 = vshrl.u32 %v1056, 7
        %v1058 = vsub.s32 0, %v1057
        %v1059 = vrot.slane %v924, %v1058
        %v1060 = vlaneseq
        %v1061 = vshrl.u32 %v1060, 7
        %v1062 = vsub.s32 0, %v1061
        %v1063 = vrot.slane %v925, %v1062
        %v1064 = vlaneseq
        %v1065 = vshrl.u32 %v1064, 7
        %v1066 = vsub.s32 0, %v1065
        %v1067 = vrot.slane %v926, %v1066
        %v1068 = vlaneseq
        %v1069 = vshrl.u32 %v1068, 7
        %v1070 = vsub.s32 0, %v1069
        %v1071 = vrot.slane %v927, %v1070
        %v1072 = vsub.f32 %v215, %v1043
        %v1073 = vsub.f32 %v216, %v1047
        %v1074 = vsub.f32 %v217, %v1051
        %v1075 = vsub.f32 %v218, %v1055
        %v1076 = vsub.f32 %v219, %v1059
        %v1077 = vsub.f32 %v220, %v1063
        %v1078 = vsub.f32 %v221, %v1067
        %v1079 = vsub.f32 %v222, %v1071
        %v1080 = vsub.f32 %v223, %v1043
        %v1081 = vsub.f32 %v224, %v1047
        %v1082 = vsub.f32 %v225, %v1051
        %v1083 = vsub.f32 %v226, %v1055
        %v1084 = vsub.f32 %v227, %v1059
        %v1085 = vsub.f32 %v228, %v1063
        %v1086 = vsub.f32 %v229, %v1067
        %v1087 = vsub.f32 %v230, %v1071
        %v1088 = vsub.f32 %v231, %v1043
        %v1089 = vsub.f32 %v232, %v1047
        %v1090 = vsub.f32 %v233, %v1051
        %v1091 = vsub.f32 %v234, %v1055
        %v1092 = vsub.f32 %v235, %v1059
        %v1093 = vsub.f32 %v236, %v1063
        %v1094 = vsub.f32 %v237, %v1067
        %v1095 = vsub.f32 %v238, %v1071
        %v1096 = vsub.f32 %v239, %v1043
        %v1097 = vsub.f32 %v240, %v1047
        %v1098 = vsub.f32 %v241, %v1051
        %v1099 = vsub.f32 %v242, %v1055
        %v1100 = vsub.f32 %v243, %v1059
        %v1101 = vsub.f32 %v244, %v1063
        %v1102 = vsub.f32 %v245, %v1067
        %v1103 = vsub.f32 %v246, %v1071
        %v1104 = vlaneseq
        %v1105 = vshrl.u32 %v1104, 7
        %v1106 = vsub.s32 1, %v1105
        %v1107 = vrot.slane %v1032, %v1106
        %v1108 = vlaneseq
        %v1109 = vshrl.u32 %v1108, 7
        %v1110 = vsub.s32 1, %v1109
        %v1111 = vrot.slane %v1033, %v1110
        %v1112 = vlaneseq
        %v1113 = vshrl.u32 %v1112, 7
        %v1114 = vsub.s32 1, %v1113
        %v1115 = vrot.slane %v1034, %v1114
        %v1116 = vlaneseq
        %v1117 = vshrl.u32 %v1116, 7
        %v1118 = vsub.s32 1, %v1117
        %v1119 = vrot.slane %v1035, %v1118
        %v1120 = vlaneseq
        %v1121 = vshrl.u32 %v1120, 7
        %v1122 = vsub.s32 1, %v1121
        %v1123 = vrot.slane %v1036, %v1122
        %v1124 = vlaneseq
        %v1125 = vshrl.u32 %v1124, 7
        %v1126 = vsub.s32 1, %v1125
        %v1127 = vrot.slane %v1037, %v1126
        %v1128 = vlaneseq
        %v1129 = vshrl.u32 %v1128, 7
        %v1130 = vsub.s32 1, %v1129
        %v1131 = vrot.slane %v1038, %v1130
        %v1132 = vlaneseq
        %v1133 = vshrl.u32 %v1132, 7
        %v1134 = vsub.s32 1, %v1133
        %v1135 = vrot.slane %v1039, %v1134
        %v1136 = vmul.f32 %v1072, %v1107
        %v1137 = vmul.f32 %v1073, %v1111
        %v1138 = vmul.f32 %v1074, %v1115
        %v1139 = vmul.f32 %v1075, %v1119
        %v1140 = vmul.f32 %v1076, %v1123
        %v1141 = vmul.f32 %v1077, %v1127
        %v1142 = vmul.f32 %v1078, %v1131
        %v1143 = vmul.f32 %v1079, %v1135
        %v1144 = vmul.f32 %v1080, %v1107
        %v1145 = vmul.f32 %v1081, %v1111
        %v1146 = vmul.f32 %v1082, %v1115
        %v1147 = vmul.f32 %v1083, %v1119
        %v1148 = vmul.f32 %v1084, %v1123
        %v1149 = vmul.f32 %v1085, %v1127
        %v1150 = vmul.f32 %v1086, %v1131
        %v1151 = vmul.f32 %v1087, %v1135
        %v1152 = vmul.f32 %v1088, %v1107
        %v1153 = vmul.f32 %v1089, %v1111
        %v1154 = vmul.f32 %v1090, %v1115
        %v1155 = vmul.f32 %v1091, %v1119
        %v1156 = vmul.f32 %v1092, %v1123
        %v1157 = vmul.f32 %v1093, %v1127
        %v1158 = vmul.f32 %v1094, %v1131
        %v1159 = vmul.f32 %v1095, %v1135
        %v1160 = vmul.f32 %v1096, %v1107
        %v1161 = vmul.f32 %v1097, %v1111
        %v1162 = vmul.f32 %v1098, %v1115
        %v1163 = vmul.f32 %v1099, %v1119
        %v1164 = vmul.f32 %v1100, %v1123
        %v1165 = vmul.f32 %v1101, %v1127
        %v1166 = vmul.f32 %v1102, %v1131
        %v1167 = vmul.f32 %v1103, %v1135
        %v1168 = vld [vmem:[%s1] sm:$0xff]
        %v1169 = vld [vmem:[%s1 + $0x8] sm:$0xff]
        %v1170 = vld [vmem:[%s1 + $0x10] sm:$0xff]
        %v1171 = vld [vmem:[%s1 + $0x18] sm:$0xff]
        %1173 = vset.pattern.permute.xlu0 0
        %1174 = vperm.xlu0 %1173, %v1168
        %v1175 = vpop.permute.xlu0 %1174
        %1178 = vset.pattern.permute.xlu0 0
        %1179 = vperm.xlu0 %1178, %v1169
        %v1180 = vpop.permute.xlu0 %1179
        %1183 = vset.pattern.permute.xlu0 0
        %1184 = vperm.xlu0 %1183, %v1170
        %v1185 = vpop.permute.xlu0 %1184
        %1188 = vset.pattern.permute.xlu0 0
        %1189 = vperm.xlu0 %1188, %v1171
        %v1190 = vpop.permute.xlu0 %1189
        %v1192 = vmul.f32 %v1136, %v1175
        %v1193 = vmul.f32 %v1137, %v1175
        %v1194 = vmul.f32 %v1138, %v1175
        %v1195 = vmul.f32 %v1139, %v1175
        %v1196 = vmul.f32 %v1140, %v1175
        %v1197 = vmul.f32 %v1141, %v1175
        %v1198 = vmul.f32 %v1142, %v1175
        %v1199 = vmul.f32 %v1143, %v1175
        %v1200 = vmul.f32 %v1144, %v1180
        %v1201 = vmul.f32 %v1145, %v1180
        %v1202 = vmul.f32 %v1146, %v1180
        %v1203 = vmul.f32 %v1147, %v1180
        %v1204 = vmul.f32 %v1148, %v1180
        %v1205 = vmul.f32 %v1149, %v1180
        %v1206 = vmul.f32 %v1150, %v1180
        %v1207 = vmul.f32 %v1151, %v1180
        %v1208 = vmul.f32 %v1152, %v1185
        %v1209 = vmul.f32 %v1153, %v1185
        %v1210 = vmul.f32 %v1154, %v1185
        %v1211 = vmul.f32 %v1155, %v1185
        %v1212 = vmul.f32 %v1156, %v1185
        %v1213 = vmul.f32 %v1157, %v1185
        %v1214 = vmul.f32 %v1158, %v1185
        %v1215 = vmul.f32 %v1159, %v1185
        %v1216 = vmul.f32 %v1160, %v1190
        %v1217 = vmul.f32 %v1161, %v1190
        %v1218 = vmul.f32 %v1162, %v1190
        %v1219 = vmul.f32 %v1163, %v1190
        %v1220 = vmul.f32 %v1164, %v1190
        %v1221 = vmul.f32 %v1165, %v1190
        %v1222 = vmul.f32 %v1166, %v1190
        %v1223 = vmul.f32 %v1167, %v1190
        %v1224 = vld [vmem:[%s2] sm:$0xff]
        %v1225 = vld [vmem:[%s2 + $0x8] sm:$0xff]
        %v1226 = vld [vmem:[%s2 + $0x10] sm:$0xff]
        %v1227 = vld [vmem:[%s2 + $0x18] sm:$0xff]
        %1229 = vset.pattern.permute.xlu0 0
        %1230 = vperm.xlu0 %1229, %v1224
        %v1231 = vpop.permute.xlu0 %1230
        %1234 = vset.pattern.permute.xlu0 0
        %1235 = vperm.xlu0 %1234, %v1225
        %v1236 = vpop.permute.xlu0 %1235
        %1239 = vset.pattern.permute.xlu0 0
        %1240 = vperm.xlu0 %1239, %v1226
        %v1241 = vpop.permute.xlu0 %1240
        %1244 = vset.pattern.permute.xlu0 0
        %1245 = vperm.xlu0 %1244, %v1227
        %v1246 = vpop.permute.xlu0 %1245
        %v1248 = vadd.f32 %v1192, %v1231
        %v1249 = vadd.f32 %v1193, %v1231
        %v1250 = vadd.f32 %v1194, %v1231
        %v1251 = vadd.f32 %v1195, %v1231
        %v1252 = vadd.f32 %v1196, %v1231
        %v1253 = vadd.f32 %v1197, %v1231
        %v1254 = vadd.f32 %v1198, %v1231
        %v1255 = vadd.f32 %v1199, %v1231
        %v1256 = vadd.f32 %v1200, %v1236
        %v1257 = vadd.f32 %v1201, %v1236
        %v1258 = vadd.f32 %v1202, %v1236
        %v1259 = vadd.f32 %v1203, %v1236
        %v1260 = vadd.f32 %v1204, %v1236
        %v1261 = vadd.f32 %v1205, %v1236
        %v1262 = vadd.f32 %v1206, %v1236
        %v1263 = vadd.f32 %v1207, %v1236
        %v1264 = vadd.f32 %v1208, %v1241
        %v1265 = vadd.f32 %v1209, %v1241
        %v1266 = vadd.f32 %v1210, %v1241
        %v1267 = vadd.f32 %v1211, %v1241
        %v1268 = vadd.f32 %v1212, %v1241
        %v1269 = vadd.f32 %v1213, %v1241
        %v1270 = vadd.f32 %v1214, %v1241
        %v1271 = vadd.f32 %v1215, %v1241
        %v1272 = vadd.f32 %v1216, %v1246
        %v1273 = vadd.f32 %v1217, %v1246
        %v1274 = vadd.f32 %v1218, %v1246
        %v1275 = vadd.f32 %v1219, %v1246
        %v1276 = vadd.f32 %v1220, %v1246
        %v1277 = vadd.f32 %v1221, %v1246
        %v1278 = vadd.f32 %v1222, %v1246
        %v1279 = vadd.f32 %v1223, %v1246
        %1280 = vst [vmem:[%s206] sm:$0xff] %v1248
        %1281 = vst [vmem:[%s206 + $0x8] sm:$0xff] %v1249
        %1282 = vst [vmem:[%s206 + $0x10] sm:$0xff] %v1250
        %1283 = vst [vmem:[%s206 + $0x18] sm:$0xff] %v1251
        %1284 = vst [vmem:[%s206 + $0x20] sm:$0xff] %v1252
        %1285 = vst [vmem:[%s206 + $0x28] sm:$0xff] %v1253
        %1286 = vst [vmem:[%s206 + $0x30] sm:$0xff] %v1254
        %1287 = vst [vmem:[%s206 + $0x38] sm:$0xff] %v1255
        %1288 = vst [vmem:[%s206 + $0x40] sm:$0xff] %v1256
        %1289 = vst [vmem:[%s206 + $0x48] sm:$0xff] %v1257
        %1290 = vst [vmem:[%s206 + $0x50] sm:$0xff] %v1258
        %1291 = vst [vmem:[%s206 + $0x58] sm:$0xff] %v1259
        %1292 = vst [vmem:[%s206 + $0x60] sm:$0xff] %v1260
        %1293 = vst [vmem:[%s206 + $0x68] sm:$0xff] %v1261
        %1294 = vst [vmem:[%s206 + $0x70] sm:$0xff] %v1262
        %1295 = vst [vmem:[%s206 + $0x78] sm:$0xff] %v1263
        %1296 = vst [vmem:[%s206 + $0x80] sm:$0xff] %v1264
        %1297 = vst [vmem:[%s206 + $0x88] sm:$0xff] %v1265
        %1298 = vst [vmem:[%s206 + $0x90] sm:$0xff] %v1266
        %1299 = vst [vmem:[%s206 + $0x98] sm:$0xff] %v1267
        %1300 = vst [vmem:[%s206 + $0xa0] sm:$0xff] %v1268
        %1301 = vst [vmem:[%s206 + $0xa8] sm:$0xff] %v1269
        %1302 = vst [vmem:[%s206 + $0xb0] sm:$0xff] %v1270
        %1303 = vst [vmem:[%s206 + $0xb8] sm:$0xff] %v1271
        %1304 = vst [vmem:[%s206 + $0xc0] sm:$0xff] %v1272
        %1305 = vst [vmem:[%s206 + $0xc8] sm:$0xff] %v1273
        %1306 = vst [vmem:[%s206 + $0xd0] sm:$0xff] %v1274
        %1307 = vst [vmem:[%s206 + $0xd8] sm:$0xff] %v1275
        %1308 = vst [vmem:[%s206 + $0xe0] sm:$0xff] %v1276
        %1309 = vst [vmem:[%s206 + $0xe8] sm:$0xff] %v1277
        %1310 = vst [vmem:[%s206 + $0xf0] sm:$0xff] %v1278
        %1311 = vst [vmem:[%s206 + $0xf8] sm:$0xff] %v1279
        %s1312 = sand.u32 %s112, 1
        %s1313 = scalar_lea.sflag [#allocation5], %s1312
        %s1314 = sand.u32 %s112, 1
        %s1315 = smul.addr %s1314, 256
        %s1316 = scalar_lea.vmem [#allocation6], %s1315
        // Predicated region
        $region41: #{tpu_custom_call.1} parent=31 // pred_check
          %p1317 = pneg %p122
        $region42: #{tpu_custom_call.1} parent=31 // pred_check_branch
          %1319 = sbr.rel (%p1317) target = $region44
        $region43: #{tpu_custom_call.1} parent=31 // pred_region
          %s1320 = smul.u32 8, %s25
          %s1322 = ssub.s32 4096, 4096
          %1323 = vsyncadd %s1313, %s1322
          %s1324 = smul.addr %s24, 32
          %s1325 = sadd.s32 %s1320, %s1324
          %s1326 = smul.addr %s1325, 128
          %s1327 = scalar_lea.hbm %s3, %s1326
          %s1328 = sshll.u32 %s1316, 4
          %s1329 = int_to_ptr.vmem [resolvable:$true] %s1328
          %1334 = dma.vmem_to_hbm [thread:$0]  %s1329, 4096, %s1327, %s1313, 1024, 1024, 64
        $region44: #{tpu_custom_call.1} parent=31 // pred_fallthru
          _
      $region32: #{tpu_custom_call.1} parent=5 // pred_fallthru
        _
      %p1335 = scmp.le.s32.totalorder 2, %s15
      // Predicated region
      $region45: #{tpu_custom_call.1} parent=5 // pred_check
        %p1336 = pneg %p1335
      $region46: #{tpu_custom_call.1} parent=5 // pred_check_branch
        %1338 = sbr.rel (%p1336) target = $region48
      $region47: #{tpu_custom_call.1} parent=5 // pred_region
        %s1339 = ssub.s32 %s15, 2
        // Predicated region
        $region49: #{tpu_custom_call.1} parent=47 // pred_check
          %p1340 = pneg %p128
        $region50: #{tpu_custom_call.1} parent=47 // pred_check_branch
          %1342 = sbr.rel (%p1340) target = $region52
        $region51: #{tpu_custom_call.1} parent=47 // pred_region
          %s1343 = sand.u32 %s113, 1
          %s1344 = scalar_lea.sflag [#allocation5], %s1343
          %s1345 = sand.u32 %s113, 1
          %s1346 = smul.addr %s1345, 256
          %s1347 = scalar_lea.vmem [#allocation6], %s1346
          %1348 = dma.done %s1344, 4096
        $region52: #{tpu_custom_call.1} parent=47 // pred_fallthru
          _
      $region48: #{tpu_custom_call.1} parent=5 // pred_fallthru
        _
    $region6: #{tpu_custom_call.1} parent=1 // loop_footer
      %s19 = sadd.s32 1, %s15
    $region7: #{tpu_custom_call.1} parent=1 // loop_footer_branch
      %14 = sbr.rel target = $region3
    $region8: #{tpu_custom_call.1} parent=1 // loop_exit
      _
    %1349 = vsyncpa [#allocation4], 1
    %s1350 = scalar_lea.sflag [#allocation4], 1
    %1351 = vsyncpa %s1350, 1
    %1352 = vsyncpa [#allocation5], 1
    %s1353 = scalar_lea.sflag [#allocation5], 1
    %1354 = vsyncpa %s1353, 1

</llo_original>
